<compile_context>
chip_gen: v6e
topology: v6e:2x2x1
jax: 0.10.0
libtpu: 0.0.40
codegen_flags: <defaults>
</compile_context>

<pallas_src>
import functools

import jax
import jax.numpy as jnp
from jax.experimental import pallas as pl
from jax.experimental.pallas import tpu as pltpu

N_EMBD = 128
NUM_HEADS = 4
HEAD_SIZE = N_EMBD // NUM_HEADS


# ---------------------------------------------------------------------------
# Kernel
# ---------------------------------------------------------------------------
def mhca_kernel(x_ref, enc_ref, wq_ref, wkv_ref, wo_ref, bo_ref, o_ref, *, matmul_dtype):
    B_blk, T, D = x_ref.shape
    _, Te, _ = enc_ref.shape
    H, hs = NUM_HEADS, HEAD_SIZE
    N = B_blk * T          # flattened query rows
    M = B_blk * Te         # flattened key/value rows
    f32 = jnp.float32

    # Flatten leading dims only; cast ONCE to the MXU input dtype.
    # (The C**-0.5 score scale is already folded into wq by the wrapper.)
    xf = x_ref[...].reshape(N, D).astype(matmul_dtype)
    ef = enc_ref[...].reshape(M, D).astype(matmul_dtype)

    # ---- fused full-width projections (128-wide MXU passes, f32 accumulation) ----
    q_full = jnp.dot(xf, wq_ref[...], preferred_element_type=f32)     # (N, H*hs)
    kv_full = jnp.dot(ef, wkv_ref[...], preferred_element_type=f32)   # (M, 2*H*hs)

    # ---- per-head attention; heads split with static 32-lane slices ----
    head_outs = []
    for h in range(H):
        lo, hi = h * hs, (h + 1) * hs
        q_h = q_full[:, lo:hi].reshape(B_blk, T, hs).astype(matmul_dtype)
        k_h = kv_full[:, lo:hi].reshape(B_blk, Te, hs).astype(matmul_dtype)
        v_h = kv_full[:, D + lo:D + hi].reshape(B_blk, Te, hs).astype(matmul_dtype)

        # scores: batched over B_blk, contract hs (no explicit transpose)
        s = jnp.einsum('btd,bsd->bts', q_h, k_h,
                       preferred_element_type=f32)                     # (B_blk, T, Te)
        m = jnp.max(s, axis=-1, keepdims=True)
        e = jnp.exp(s - m)
        denom = jnp.sum(e, axis=-1, keepdims=True)
        p = e * pl.reciprocal(denom, approx=True)                      # softmax on EUP

        o_h = jnp.einsum('bts,bsd->btd', p.astype(matmul_dtype), v_h,
                         preferred_element_type=f32)                   # (B_blk, T, hs)
        head_outs.append(o_h)

    # ---- concat heads along lanes and do ONE full-width output projection ----
    cat = jnp.concatenate(head_outs, axis=-1).reshape(N, D)            # (N, H*hs)
    out = jnp.dot(cat.astype(matmul_dtype), wo_ref[...],
                  preferred_element_type=f32) + bo_ref[...]            # (N, D)

    o_ref[...] = out.reshape(B_blk, T, D).astype(o_ref.dtype)


# ---------------------------------------------------------------------------
# Wrapper
# ---------------------------------------------------------------------------
def _vmem_estimate_bytes(b_blk, T, Te, wt_itemsize):
    """Rough per-step VMEM footprint (tiles + weights + major intermediates)."""
    D, H = N_EMBD, NUM_HEADS
    N, M = b_blk * T, b_blk * Te
    f32 = 4
    tiles = 2 * (N * D + M * D + N * D) * f32                 # x/enc/out, double-buffered
    wts = 2 * (D * D + D * 2 * D + D * D) * wt_itemsize + 2 * D * f32
    inter = (N * D + M * 2 * D + 3 * H * b_blk * T * Te + N * D) * f32
    return tiles + wts + inter


def _pick_b_blk(B, T, Te, wt_itemsize):
    divisors = [d for d in range(1, B + 1) if B % d == 0]
    target = max(1, 512 // max(T, 1))                          # ~512 query rows per step
    fit = [d for d in divisors
           if d <= target and _vmem_estimate_bytes(d, T, Te, wt_itemsize) <= (40 << 20)]
    b_blk = max(fit) if fit else 1
    # keep >= 2 grid steps when possible so v7x's two TensorCores both get work
    if B // b_blk < 2:
        smaller = [d for d in divisors if d < b_blk and B // d >= 2]
        if smaller:
            b_blk = max(smaller)
    return b_blk


def multi_head_cross_attention(x, enc_output, params, *,
                               matmul_dtype=jnp.bfloat16, b_blk=None):
    B, T, D = x.shape
    Be, Te, De = enc_output.shape
    assert D == N_EMBD and De == N_EMBD and Be == B
    H, hs = NUM_HEADS, HEAD_SIZE
    f32 = jnp.float32

    wt_itemsize = jnp.dtype(matmul_dtype).itemsize
    if b_blk is None:
        b_blk = _pick_b_blk(B, T, Te, wt_itemsize)
    assert B % b_blk == 0, "B must be divisible by b_blk"

    # NOTE: the PyTorch reference scales scores by C**-0.5 with C = n_embd (=128),
    # NOT head_size**-0.5. This is intentional to match the module.
    scale = float(N_EMBD) ** -0.5

    # Pack per-head weights (H, D, hs) into full-width (D, H*hs) matrices so the kernel
    # can run a single 128-wide MXU pass per projection.  Fold the score scale into wq
    # in f32 BEFORE any low-precision cast.
    wq_full = (jnp.transpose(params["wq"], (1, 0, 2)).reshape(D, H * hs) * scale)
    wk_full = jnp.transpose(params["wk"], (1, 0, 2)).reshape(D, H * hs)
    wv_full = jnp.transpose(params["wv"], (1, 0, 2)).reshape(D, H * hs)
    wkv = jnp.concatenate([wk_full, wv_full], axis=1)          # (D, 2*H*hs)
    wo = params["wo"]                                          # (H*hs, D), head-major rows
    bo = params["bo"].reshape(1, D).astype(f32)

    wq_full = wq_full.astype(matmul_dtype)
    wkv = wkv.astype(matmul_dtype)
    wo = wo.astype(matmul_dtype)

    kernel = functools.partial(mhca_kernel, matmul_dtype=matmul_dtype)

    def batched(t):
        return pl.BlockSpec((b_blk, t, D), lambda b: (b, 0, 0))

    def full(shape):
        zeros = (0,) * len(shape)
        return pl.BlockSpec(shape, lambda b, _z=zeros: _z)

    # Advisory cost estimate so XLA can schedule around the kernel.
    flops = (2 * B * T * D * D                      # q projection
             + 2 * B * Te * D * (2 * D)             # fused k|v projection
             + 2 * 2 * B * H * T * Te * hs          # scores + p@v
             + 2 * B * T * D * D)                   # output projection
    transcendentals = B * H * T * Te                # exp in softmax
    bytes_accessed = (B * T * D + B * Te * D + B * T * D) * 4 \
        + (D * D + D * 2 * D + D * D) * wt_itemsize + D * 4
    cost = pl.CostEstimate(flops=flops, transcendentals=transcendentals,
                           bytes_accessed=bytes_accessed)

    # Only raise the scoped-VMEM limit when the per-step footprint needs it
    # (v7x: 64 MiB physical, 32 MiB default scoped).
    est = _vmem_estimate_bytes(b_blk, T, Te, wt_itemsize)
    vmem_limit = None
    if est > (24 << 20):
        vmem_limit = int(min(100 << 20, est * 2))

    return pl.pallas_call(
        kernel,
        out_shape=jax.ShapeDtypeStruct((B, T, D), jnp.float32),
        grid_spec=pltpu.PrefetchScalarGridSpec(
            num_scalar_prefetch=0,
            grid=(B // b_blk,),
            in_specs=[batched(T), batched(Te),
                      full(wq_full.shape), full(wkv.shape),
                      full(wo.shape), full(bo.shape)],
            out_specs=batched(T),
        ),
        compiler_params=pltpu.CompilerParams(
            dimension_semantics=("parallel",),
            vmem_limit_bytes=vmem_limit),
        cost_estimate=cost,
    )(x, enc_output, wq_full, wkv, wo, bo)


# ---------------------------------------------------------------------------
# Params + pure-JAX reference (mirrors the PyTorch forward, dropout = identity)
# ---------------------------------------------------------------------------
def make_params(key):
    """Deterministic init. q/k/v stored head-major (H, D, hs); output proj (in, out)."""
    ks = jax.random.split(key, 5)
    D, H, hs = N_EMBD, NUM_HEADS, HEAD_SIZE

    def w(k, shape, scale=0.05):
        return jax.random.normal(k, shape, dtype=jnp.float32) * scale

    return {
        "wq": w(ks[0], (H, D, hs)),
        "wk": w(ks[1], (H, D, hs)),
        "wv": w(ks[2], (H, D, hs)),
        "wo": w(ks[3], (D, D)),       # (in = H*hs concat order, out = D)
        "bo": w(ks[4], (D,)),
    }


def mhca_ref(x, enc, p):
    scale = float(N_EMBD) ** -0.5
    outs = []
    for h in range(NUM_HEADS):
        q = x @ p["wq"][h]                                  # (B, T, hs)
        k = enc @ p["wk"][h]                                # (B, Te, hs)
        v = enc @ p["wv"][h]
        wei = jnp.einsum('btd,bsd->bts', q, k) * scale
        wei = jax.nn.softmax(wei, axis=-1)
        outs.append(jnp.einsum('bts,bsd->btd', wei, v))
    cat = jnp.concatenate(outs, axis=-1)                    # (B, T, H*hs)
    return cat @ p["wo"] + p["bo"]


if __name__ == "__main__":
    key = jax.random.PRNGKey(0)
    k_x, k_e, k_p = jax.random.split(key, 3)

    B, T, Te = 4, 8, 8
    x = jax.random.normal(k_x, (B, T, N_EMBD), dtype=jnp.float32)
    enc_output = jax.random.normal(k_e, (B, Te, N_EMBD), dtype=jnp.float32)
    params = make_params(k_p)

    ref = mhca_ref(x, enc_output, params)

    # Exact-parity path (f32 MXU inputs); approx reciprocal => slightly loose tol.
    out_f32 = multi_head_cross_attention(x, enc_output, params,
                                         matmul_dtype=jnp.float32)
    out_f32 = jax.block_until_ready(out_f32)
    assert out_f32.shape == (B, T, N_EMBD)
    assert jnp.allclose(out_f32, ref, atol=2e-3, rtol=2e-3), "f32 path mismatch vs reference"

    # Production path (bf16 MXU inputs, f32 accumulation / softmax).
    out_bf16 = multi_head_cross_attention(x, enc_output, params,
                                          matmul_dtype=jnp.bfloat16)
    out_bf16 = jax.block_until_ready(out_bf16)
    assert jnp.allclose(out_bf16, ref, atol=3e-2, rtol=3e-2), "bf16 path mismatch vs reference"

    print("KERNEL_OK")
</pallas_src>

<mosaic_0001>
module attributes {stable_mosaic.version = 11 : i64} {
  func.func @mhca_kernel(%arg0: i32, %arg1: memref<2x8x128xf32, #tpu.memory_space<vmem>>, %arg2: memref<2x8x128xf32, #tpu.memory_space<vmem>>, %arg3: memref<128x128xf32, #tpu.memory_space<vmem>>, %arg4: memref<128x256xf32, #tpu.memory_space<vmem>>, %arg5: memref<128x128xf32, #tpu.memory_space<vmem>>, %arg6: memref<1x128xf32, #tpu.memory_space<vmem>>, %arg7: memref<2x8x128xf32, #tpu.memory_space<vmem>>) attributes {dimension_semantics = [#tpu.dimension_semantics<parallel>], iteration_bounds = array<i64: 2>, scalar_prefetch = 0 : i64, scratch_operands = 0 : i64, tpu.core_type = #tpu.core_type<tc>, window_params = [{transform_indices = @transform_0, window_bounds = array<i64: 2, 8, 128>}, {transform_indices = @transform_1, window_bounds = array<i64: 2, 8, 128>}, {pipeline_mode = #tpu.pipeline_mode<synchronous>, transform_indices = @transform_2, window_bounds = array<i64: 128, 128>}, {pipeline_mode = #tpu.pipeline_mode<synchronous>, transform_indices = @transform_3, window_bounds = array<i64: 128, 256>}, {pipeline_mode = #tpu.pipeline_mode<synchronous>, transform_indices = @transform_4, window_bounds = array<i64: 128, 128>}, {pipeline_mode = #tpu.pipeline_mode<synchronous>, transform_indices = @transform_5, window_bounds = array<i64: 1, 128>}, {transform_indices = @transform_6, window_bounds = array<i64: 2, 8, 128>}]} {
    %c0 = arith.constant 0 : index
    %c0_0 = arith.constant 0 : index
    %c0_1 = arith.constant 0 : index
    %0 = vector.load %arg1[%c0, %c0_0, %c0_1] : memref<2x8x128xf32, #tpu.memory_space<vmem>>, vector<2x8x128xf32>
    %1 = vector.shape_cast %0 : vector<2x8x128xf32> to vector<16x128xf32>
    %c0_2 = arith.constant 0 : index
    %c0_3 = arith.constant 0 : index
    %c0_4 = arith.constant 0 : index
    %2 = vector.load %arg2[%c0_2, %c0_3, %c0_4] : memref<2x8x128xf32, #tpu.memory_space<vmem>>, vector<2x8x128xf32>
    %3 = vector.shape_cast %2 : vector<2x8x128xf32> to vector<16x128xf32>
    %c0_5 = arith.constant 0 : index
    %c0_6 = arith.constant 0 : index
    %4 = vector.load %arg3[%c0_5, %c0_6] : memref<128x128xf32, #tpu.memory_space<vmem>>, vector<128x128xf32>
    %cst = arith.constant dense<0.000000e+00> : vector<16x128xf32>
    %5 = tpu.matmul %1, %4, %cst {dimension_numbers = #tpu.dot_dimension_numbers<[1], [0], [0], [1], [0, 0, 1, 1], [], []>} : vector<16x128xf32>, vector<128x128xf32>, vector<16x128xf32> -> vector<16x128xf32>
    %c0_7 = arith.constant 0 : index
    %c0_8 = arith.constant 0 : index
    %6 = vector.load %arg4[%c0_7, %c0_8] : memref<128x256xf32, #tpu.memory_space<vmem>>, vector<128x256xf32>
    %cst_9 = arith.constant dense<0.000000e+00> : vector<16x256xf32>
    %7 = tpu.matmul %3, %6, %cst_9 {dimension_numbers = #tpu.dot_dimension_numbers<[1], [0], [0], [1], [0, 0, 1, 1], [], []>} : vector<16x128xf32>, vector<128x256xf32>, vector<16x256xf32> -> vector<16x256xf32>
    %8 = vector.extract_strided_slice %5 {offsets = [0, 0], sizes = [16, 32], strides = [1, 1]} : vector<16x128xf32> to vector<16x32xf32>
    %9 = vector.shape_cast %8 : vector<16x32xf32> to vector<2x8x32xf32>
    %10 = vector.extract_strided_slice %7 {offsets = [0, 0], sizes = [16, 32], strides = [1, 1]} : vector<16x256xf32> to vector<16x32xf32>
    %11 = vector.shape_cast %10 : vector<16x32xf32> to vector<2x8x32xf32>
    %12 = vector.extract_strided_slice %7 {offsets = [0, 128], sizes = [16, 32], strides = [1, 1]} : vector<16x256xf32> to vector<16x32xf32>
    %13 = vector.shape_cast %12 : vector<16x32xf32> to vector<2x8x32xf32>
    "tpu.trace_start"() <{level = 10 : i32, message = "btd,bsd->bts"}> : () -> ()
    %cst_10 = arith.constant dense<0.000000e+00> : vector<2x8x8xf32>
    %14 = tpu.matmul %9, %11, %cst_10 {dimension_numbers = #tpu.dot_dimension_numbers<[2], [2], [1], [1], [0, 0, 0, 1, 1, 1], [0], [0]>} : vector<2x8x32xf32>, vector<2x8x32xf32>, vector<2x8x8xf32> -> vector<2x8x8xf32>
    "tpu.trace_stop"() : () -> ()
    %cst_11 = arith.constant dense<0xFF800000> : vector<2x8xf32>
    %15 = vector.multi_reduction <maximumf>, %14, %cst_11 [2] : vector<2x8x8xf32> to vector<2x8xf32>
    %16 = vector.shape_cast %15 : vector<2x8xf32> to vector<2x8x1xf32>
    %17 = vector.broadcast %16 : vector<2x8x1xf32> to vector<2x8x8xf32>
    %18 = arith.subf %14, %17 : vector<2x8x8xf32>
    %19 = math.exp %18 : vector<2x8x8xf32>
    %cst_12 = arith.constant dense<0.000000e+00> : vector<2x8xf32>
    %20 = vector.multi_reduction <add>, %19, %cst_12 [2] : vector<2x8x8xf32> to vector<2x8xf32>
    %21 = vector.shape_cast %20 : vector<2x8xf32> to vector<2x8x1xf32>
    %22 = tpu.reciprocal %21 {approx = true} : vector<2x8x1xf32> -> vector<2x8x1xf32>
    %23 = vector.broadcast %22 : vector<2x8x1xf32> to vector<2x8x8xf32>
    %24 = arith.mulf %19, %23 : vector<2x8x8xf32>
    "tpu.trace_start"() <{level = 10 : i32, message = "bts,bsd->btd"}> : () -> ()
    %cst_13 = arith.constant dense<0.000000e+00> : vector<2x8x32xf32>
    %25 = tpu.matmul %24, %13, %cst_13 {dimension_numbers = #tpu.dot_dimension_numbers<[2], [1], [1], [2], [0, 0, 0, 1, 1, 2], [0], [0]>} : vector<2x8x8xf32>, vector<2x8x32xf32>, vector<2x8x32xf32> -> vector<2x8x32xf32>
    "tpu.trace_stop"() : () -> ()
    %26 = vector.extract_strided_slice %5 {offsets = [0, 32], sizes = [16, 32], strides = [1, 1]} : vector<16x128xf32> to vector<16x32xf32>
    %27 = vector.shape_cast %26 : vector<16x32xf32> to vector<2x8x32xf32>
    %28 = vector.extract_strided_slice %7 {offsets = [0, 32], sizes = [16, 32], strides = [1, 1]} : vector<16x256xf32> to vector<16x32xf32>
    %29 = vector.shape_cast %28 : vector<16x32xf32> to vector<2x8x32xf32>
    %30 = vector.extract_strided_slice %7 {offsets = [0, 160], sizes = [16, 32], strides = [1, 1]} : vector<16x256xf32> to vector<16x32xf32>
    %31 = vector.shape_cast %30 : vector<16x32xf32> to vector<2x8x32xf32>
    "tpu.trace_start"() <{level = 10 : i32, message = "btd,bsd->bts"}> : () -> ()
    %cst_14 = arith.constant dense<0.000000e+00> : vector<2x8x8xf32>
    %32 = tpu.matmul %27, %29, %cst_14 {dimension_numbers = #tpu.dot_dimension_numbers<[2], [2], [1], [1], [0, 0, 0, 1, 1, 1], [0], [0]>} : vector<2x8x32xf32>, vector<2x8x32xf32>, vector<2x8x8xf32> -> vector<2x8x8xf32>
    "tpu.trace_stop"() : () -> ()
    %cst_15 = arith.constant dense<0xFF800000> : vector<2x8xf32>
    %33 = vector.multi_reduction <maximumf>, %32, %cst_15 [2] : vector<2x8x8xf32> to vector<2x8xf32>
    %34 = vector.shape_cast %33 : vector<2x8xf32> to vector<2x8x1xf32>
    %35 = vector.broadcast %34 : vector<2x8x1xf32> to vector<2x8x8xf32>
    %36 = arith.subf %32, %35 : vector<2x8x8xf32>
    %37 = math.exp %36 : vector<2x8x8xf32>
    %cst_16 = arith.constant dense<0.000000e+00> : vector<2x8xf32>
    %38 = vector.multi_reduction <add>, %37, %cst_16 [2] : vector<2x8x8xf32> to vector<2x8xf32>
    %39 = vector.shape_cast %38 : vector<2x8xf32> to vector<2x8x1xf32>
    %40 = tpu.reciprocal %39 {approx = true} : vector<2x8x1xf32> -> vector<2x8x1xf32>
    %41 = vector.broadcast %40 : vector<2x8x1xf32> to vector<2x8x8xf32>
    %42 = arith.mulf %37, %41 : vector<2x8x8xf32>
    "tpu.trace_start"() <{level = 10 : i32, message = "bts,bsd->btd"}> : () -> ()
    %cst_17 = arith.constant dense<0.000000e+00> : vector<2x8x32xf32>
    %43 = tpu.matmul %42, %31, %cst_17 {dimension_numbers = #tpu.dot_dimension_numbers<[2], [1], [1], [2], [0, 0, 0, 1, 1, 2], [0], [0]>} : vector<2x8x8xf32>, vector<2x8x32xf32>, vector<2x8x32xf32> -> vector<2x8x32xf32>
    "tpu.trace_stop"() : () -> ()
    %44 = vector.extract_strided_slice %5 {offsets = [0, 64], sizes = [16, 32], strides = [1, 1]} : vector<16x128xf32> to vector<16x32xf32>
    %45 = vector.shape_cast %44 : vector<16x32xf32> to vector<2x8x32xf32>
    %46 = vector.extract_strided_slice %7 {offsets = [0, 64], sizes = [16, 32], strides = [1, 1]} : vector<16x256xf32> to vector<16x32xf32>
    %47 = vector.shape_cast %46 : vector<16x32xf32> to vector<2x8x32xf32>
    %48 = vector.extract_strided_slice %7 {offsets = [0, 192], sizes = [16, 32], strides = [1, 1]} : vector<16x256xf32> to vector<16x32xf32>
    %49 = vector.shape_cast %48 : vector<16x32xf32> to vector<2x8x32xf32>
    "tpu.trace_start"() <{level = 10 : i32, message = "btd,bsd->bts"}> : () -> ()
    %cst_18 = arith.constant dense<0.000000e+00> : vector<2x8x8xf32>
    %50 = tpu.matmul %45, %47, %cst_18 {dimension_numbers = #tpu.dot_dimension_numbers<[2], [2], [1], [1], [0, 0, 0, 1, 1, 1], [0], [0]>} : vector<2x8x32xf32>, vector<2x8x32xf32>, vector<2x8x8xf32> -> vector<2x8x8xf32>
    "tpu.trace_stop"() : () -> ()
    %cst_19 = arith.constant dense<0xFF800000> : vector<2x8xf32>
    %51 = vector.multi_reduction <maximumf>, %50, %cst_19 [2] : vector<2x8x8xf32> to vector<2x8xf32>
    %52 = vector.shape_cast %51 : vector<2x8xf32> to vector<2x8x1xf32>
    %53 = vector.broadcast %52 : vector<2x8x1xf32> to vector<2x8x8xf32>
    %54 = arith.subf %50, %53 : vector<2x8x8xf32>
    %55 = math.exp %54 : vector<2x8x8xf32>
    %cst_20 = arith.constant dense<0.000000e+00> : vector<2x8xf32>
    %56 = vector.multi_reduction <add>, %55, %cst_20 [2] : vector<2x8x8xf32> to vector<2x8xf32>
    %57 = vector.shape_cast %56 : vector<2x8xf32> to vector<2x8x1xf32>
    %58 = tpu.reciprocal %57 {approx = true} : vector<2x8x1xf32> -> vector<2x8x1xf32>
    %59 = vector.broadcast %58 : vector<2x8x1xf32> to vector<2x8x8xf32>
    %60 = arith.mulf %55, %59 : vector<2x8x8xf32>
    "tpu.trace_start"() <{level = 10 : i32, message = "bts,bsd->btd"}> : () -> ()
    %cst_21 = arith.constant dense<0.000000e+00> : vector<2x8x32xf32>
    %61 = tpu.matmul %60, %49, %cst_21 {dimension_numbers = #tpu.dot_dimension_numbers<[2], [1], [1], [2], [0, 0, 0, 1, 1, 2], [0], [0]>} : vector<2x8x8xf32>, vector<2x8x32xf32>, vector<2x8x32xf32> -> vector<2x8x32xf32>
    "tpu.trace_stop"() : () -> ()
    %62 = vector.extract_strided_slice %5 {offsets = [0, 96], sizes = [16, 32], strides = [1, 1]} : vector<16x128xf32> to vector<16x32xf32>
    %63 = vector.shape_cast %62 : vector<16x32xf32> to vector<2x8x32xf32>
    %64 = vector.extract_strided_slice %7 {offsets = [0, 96], sizes = [16, 32], strides = [1, 1]} : vector<16x256xf32> to vector<16x32xf32>
    %65 = vector.shape_cast %64 : vector<16x32xf32> to vector<2x8x32xf32>
    %66 = vector.extract_strided_slice %7 {offsets = [0, 224], sizes = [16, 32], strides = [1, 1]} : vector<16x256xf32> to vector<16x32xf32>
    %67 = vector.shape_cast %66 : vector<16x32xf32> to vector<2x8x32xf32>
    "tpu.trace_start"() <{level = 10 : i32, message = "btd,bsd->bts"}> : () -> ()
    %cst_22 = arith.constant dense<0.000000e+00> : vector<2x8x8xf32>
    %68 = tpu.matmul %63, %65, %cst_22 {dimension_numbers = #tpu.dot_dimension_numbers<[2], [2], [1], [1], [0, 0, 0, 1, 1, 1], [0], [0]>} : vector<2x8x32xf32>, vector<2x8x32xf32>, vector<2x8x8xf32> -> vector<2x8x8xf32>
    "tpu.trace_stop"() : () -> ()
    %cst_23 = arith.constant dense<0xFF800000> : vector<2x8xf32>
    %69 = vector.multi_reduction <maximumf>, %68, %cst_23 [2] : vector<2x8x8xf32> to vector<2x8xf32>
    %70 = vector.shape_cast %69 : vector<2x8xf32> to vector<2x8x1xf32>
    %71 = vector.broadcast %70 : vector<2x8x1xf32> to vector<2x8x8xf32>
    %72 = arith.subf %68, %71 : vector<2x8x8xf32>
    %73 = math.exp %72 : vector<2x8x8xf32>
    %cst_24 = arith.constant dense<0.000000e+00> : vector<2x8xf32>
    %74 = vector.multi_reduction <add>, %73, %cst_24 [2] : vector<2x8x8xf32> to vector<2x8xf32>
    %75 = vector.shape_cast %74 : vector<2x8xf32> to vector<2x8x1xf32>
    %76 = tpu.reciprocal %75 {approx = true} : vector<2x8x1xf32> -> vector<2x8x1xf32>
    %77 = vector.broadcast %76 : vector<2x8x1xf32> to vector<2x8x8xf32>
    %78 = arith.mulf %73, %77 : vector<2x8x8xf32>
    "tpu.trace_start"() <{level = 10 : i32, message = "bts,bsd->btd"}> : () -> ()
    %cst_25 = arith.constant dense<0.000000e+00> : vector<2x8x32xf32>
    %79 = tpu.matmul %78, %67, %cst_25 {dimension_numbers = #tpu.dot_dimension_numbers<[2], [1], [1], [2], [0, 0, 0, 1, 1, 2], [0], [0]>} : vector<2x8x8xf32>, vector<2x8x32xf32>, vector<2x8x32xf32> -> vector<2x8x32xf32>
    "tpu.trace_stop"() : () -> ()
    %80 = tpu.concatenate %25, %43, %61, %79 in 2 : vector<2x8x32xf32>, vector<2x8x32xf32>, vector<2x8x32xf32>, vector<2x8x32xf32> -> vector<2x8x128xf32>
    %81 = vector.shape_cast %80 : vector<2x8x128xf32> to vector<16x128xf32>
    %c0_26 = arith.constant 0 : index
    %c0_27 = arith.constant 0 : index
    %82 = vector.load %arg5[%c0_26, %c0_27] : memref<128x128xf32, #tpu.memory_space<vmem>>, vector<128x128xf32>
    %cst_28 = arith.constant dense<0.000000e+00> : vector<16x128xf32>
    %83 = tpu.matmul %81, %82, %cst_28 {dimension_numbers = #tpu.dot_dimension_numbers<[1], [0], [0], [1], [0, 0, 1, 1], [], []>} : vector<16x128xf32>, vector<128x128xf32>, vector<16x128xf32> -> vector<16x128xf32>
    %c0_29 = arith.constant 0 : index
    %c0_30 = arith.constant 0 : index
    %84 = vector.load %arg6[%c0_29, %c0_30] : memref<1x128xf32, #tpu.memory_space<vmem>>, vector<1x128xf32>
    %85 = vector.broadcast %84 : vector<1x128xf32> to vector<16x128xf32>
    %86 = arith.addf %83, %85 : vector<16x128xf32>
    %87 = vector.shape_cast %86 : vector<16x128xf32> to vector<2x8x128xf32>
    %c0_31 = arith.constant 0 : index
    %c0_32 = arith.constant 0 : index
    %c0_33 = arith.constant 0 : index
    %88 = vector.load %arg7[%c0_31, %c0_32, %c0_33] : memref<2x8x128xf32, #tpu.memory_space<vmem>>, vector<2x8x128xf32>
    tpu.vector_store %arg7[%c0_31, %c0_32, %c0_33], %87 {strides = array<i32>} : memref<2x8x128xf32, #tpu.memory_space<vmem>>, vector<2x8x128xf32>,
    return
  }
  func.func @transform_0(%arg0: i32) -> (i32, i32, i32) {
    %c0_i32 = arith.constant 0 : i32
    %c0_i32_0 = arith.constant 0 : i32
    %c0_i32_1 = arith.constant 0 : i32
    return %arg0, %c0_i32, %c0_i32_0 : i32, i32, i32
  }
  func.func @transform_1(%arg0: i32) -> (i32, i32, i32) {
    %c0_i32 = arith.constant 0 : i32
    %c0_i32_0 = arith.constant 0 : i32
    %c0_i32_1 = arith.constant 0 : i32
    return %arg0, %c0_i32, %c0_i32_0 : i32, i32, i32
  }
  func.func @transform_2(%arg0: i32) -> (i32, i32) {
    %c0_i32 = arith.constant 0 : i32
    %c0_i32_0 = arith.constant 0 : i32
    %c0_i32_1 = arith.constant 0 : i32
    return %c0_i32, %c0_i32_0 : i32, i32
  }
  func.func @transform_3(%arg0: i32) -> (i32, i32) {
    %c0_i32 = arith.constant 0 : i32
    %c0_i32_0 = arith.constant 0 : i32
    %c0_i32_1 = arith.constant 0 : i32
    return %c0_i32, %c0_i32_0 : i32, i32
  }
  func.func @transform_4(%arg0: i32) -> (i32, i32) {
    %c0_i32 = arith.constant 0 : i32
    %c0_i32_0 = arith.constant 0 : i32
    %c0_i32_1 = arith.constant 0 : i32
    return %c0_i32, %c0_i32_0 : i32, i32
  }
  func.func @transform_5(%arg0: i32) -> (i32, i32) {
    %c0_i32 = arith.constant 0 : i32
    %c0_i32_0 = arith.constant 0 : i32
    %c0_i32_1 = arith.constant 0 : i32
    return %c0_i32, %c0_i32_0 : i32, i32
  }
  func.func @transform_6(%arg0: i32) -> (i32, i32, i32) {
    %c0_i32 = arith.constant 0 : i32
    %c0_i32_0 = arith.constant 0 : i32
    %c0_i32_1 = arith.constant 0 : i32
    return %arg0, %c0_i32, %c0_i32_0 : i32, i32, i32
  }
}

</mosaic_0001>

<llo_original>
// kernel: tpu_custom_call.1
$region0: #{tpu_custom_call.1}
  #allocation0 [shape = 'u32[]', space=smem, size = 0x4, offset = 0x4, fixed_abs, tag = 'smem constant byte address 0x4 - core index']
  #allocation1 [shape = 'u32[144,128]{1,0:T(1,128)}', space=vmem, size = 0x12000, scoped, tag = 'internal scratch']
  %s0 = inlined_call_operand.hbm [shape: f32[4,8,128], index: 0, kind: input, shape index: {}]
  %s1 = inlined_call_operand.hbm [shape: f32[4,8,128], index: 1, kind: input, shape index: {}]
  %s2 = inlined_call_operand.hbm [shape: f32[128,128], index: 2, kind: input, shape index: {}]
  %s3 = inlined_call_operand.hbm [shape: f32[128,256], index: 3, kind: input, shape index: {}]
  %s4 = inlined_call_operand.hbm [shape: f32[128,128], index: 4, kind: input, shape index: {}]
  %s5 = inlined_call_operand.vmem [shape: f32[1,128], index: 5, kind: input, shape index: {}]
  %s6 = inlined_call_operand.hbm [shape: f32[4,8,128], index: 6, kind: output, shape index: {}]
  %s7 = sld [smem:[#allocation0]]
  $region77: #{tpu_custom_call.1} parent=0
    _
  %s9 = ssub.s32 1, %s7
  %s10 = scalar_select 0, %s9, %s7
  $region1: #{tpu_custom_call.1} parent=0
    #allocation2 [shape = 'u8[16384]{0}', space=vmem, size = 0x4000, scoped, tag = 'input window, operand 0']
    #allocation3 [shape = 's32[2]{0}', space=sflag, size = 0x8, scoped, tag = 'scoped memory for tpu_custom_call.1']
    #allocation4 [shape = 's32[2]{0}', space=sflag, size = 0x8, scoped, tag = 'scoped memory for tpu_custom_call.1']
    #allocation5 [shape = 'u8[16384]{0}', space=vmem, size = 0x4000, scoped, tag = 'input window, operand 1']
    #allocation6 [shape = 's32[2]{0}', space=sflag, size = 0x8, scoped, tag = 'scoped memory for tpu_custom_call.1']
    #allocation7 [shape = 'u8[65536]{0}', space=vmem, size = 0x10000, scoped, tag = 'input window, operand 2, single buffered']
    #allocation8 [shape = 'u8[131072]{0}', space=vmem, size = 0x20000, scoped, tag = 'input window, operand 3, single buffered']
    #allocation9 [shape = 's32[1]{0}', space=sflag, size = 0x4, scoped, tag = 'scoped memory for tpu_custom_call.1']
    #allocation10 [shape = 'u8[65536]{0}', space=vmem, size = 0x10000, scoped, tag = 'input window, operand 4, single buffered']
    #allocation11 [shape = 'u8[16384]{0}', space=vmem, size = 0x4000, scoped, tag = 'output window, operand 0']
    %11 = vsyncpa [#allocation3], 0
    %s12 = scalar_lea.sflag [#allocation3], 1
    %13 = vsyncpa %s12, 0
    %14 = vsyncpa [#allocation6], 0
    %s15 = scalar_lea.sflag [#allocation6], 1
    %16 = vsyncpa %s15, 0
    %17 = vsyncpa [#allocation9], 0
    %18 = vsyncpa [#allocation4], 0
    %s19 = scalar_lea.sflag [#allocation4], 1
    %20 = vsyncpa %s19, 0
    loop: start=0, step=1, limit=4
    $region2: #{tpu_custom_call.1} parent=1 // loop_pre_header
      _
    $region3: #{tpu_custom_call.1} parent=1 // loop_header
      %s22 = sphi 0, %s26
      %p23 = scmp.ge.s32.totalorder %s22, 4
      %s32 = sphi 0, %s34
      %s35 = sphi 0, %s32
      %s36 = sphi 0, %s35
      %s52 = sphi 0, %s36
      %s58 = sphi 0, %s60
      %s61 = sphi 0, %s58
      %s62 = sphi 0, %s61
      %s78 = sphi 0, %s62
      %s82 = sphi 0, %s82
      %s84 = sphi 0, %s82
      %s85 = sphi 0, %s84
      %s99 = sphi 0, %s85
      %s103 = sphi 0, %s103
      %s105 = sphi 0, %s103
      %s106 = sphi 0, %s105
      %s120 = sphi 0, %s106
      %s124 = sphi 0, %s124
      %s126 = sphi 0, %s124
      %s127 = sphi 0, %s126
      %s141 = sphi 0, %s127
      %s145 = sphi 0, %s145
      %s147 = sphi 0, %s145
      %s148 = sphi 0, %s147
      %s162 = sphi 0, %s148
      %s168 = sphi 0, %s170
      %s171 = sphi 0, %s168
      %s172 = sphi 0, %s171
      %s188 = sphi 0, %s172
    $region4: #{tpu_custom_call.1} parent=1 // loop_header_branch
      %25 = sbr.rel (%p23) target = $region8
    $region5: #{tpu_custom_call.1} parent=1 // loop_body
      %s27 = ssub.s32 %s22, 1
      %s28 = ssub.s32 %s22, 2
      %s29 = sadd.s32 %s22, 1
      %s30 = ssub.s32 %s22, %s29
      %p31 = scmp.eq.s32.totalorder %s30, 0
      %s33 = sadd.s32 %s32, 1
      %s34 = scalar_select %p31, %s32, %s33
      %p37 = pneg %p31
      %p38 = scmp.eq.s32.totalorder %s22, 1
      %p39 = por %p37, %p38
      %p40 = scmp.ne.s32.totalorder %s32, %s35
      %p41 = scmp.eq.s32.totalorder %s22, 0
      %p42 = por %p40, %p41
      %p43 = scmp.ne.s32.totalorder %s32, %s35
      %p44 = scmp.eq.s32.totalorder %s27, 1
      %p45 = por %p43, %p44
      %p46 = scmp.ne.s32.totalorder %s35, %s36
      %p47 = scmp.eq.s32.totalorder %s27, 0
      %p48 = por %p46, %p47
      %p49 = scmp.ne.s32.totalorder %s35, %s36
      %p50 = scmp.eq.s32.totalorder %s28, 1
      %p51 = por %p49, %p50
      %p53 = scmp.ne.s32.totalorder %s36, %s52
      %p54 = scmp.eq.s32.totalorder %s28, 0
      %p55 = por %p53, %p54
      %s56 = ssub.s32 %s22, %s29
      %p57 = scmp.eq.s32.totalorder %s56, 0
      %s59 = sadd.s32 %s58, 1
      %s60 = scalar_select %p57, %s58, %s59
      %p63 = pneg %p57
      %p64 = scmp.eq.s32.totalorder %s22, 1
      %p65 = por %p63, %p64
      %p66 = scmp.ne.s32.totalorder %s58, %s61
      %p67 = scmp.eq.s32.totalorder %s22, 0
      %p68 = por %p66, %p67
      %p69 = scmp.ne.s32.totalorder %s58, %s61
      %p70 = scmp.eq.s32.totalorder %s27, 1
      %p71 = por %p69, %p70
      %p72 = scmp.ne.s32.totalorder %s61, %s62
      %p73 = scmp.eq.s32.totalorder %s27, 0
      %p74 = por %p72, %p73
      %p75 = scmp.ne.s32.totalorder %s61, %s62
      %p76 = scmp.eq.s32.totalorder %s28, 1
      %p77 = por %p75, %p76
      %p79 = scmp.ne.s32.totalorder %s62, %s78
      %p80 = scmp.eq.s32.totalorder %s28, 0
      %p81 = por %p79, %p80
      %s83 = sadd.s32 %s82, 1
      %p86 = scmp.eq.s32.totalorder %s22, 1
      %p87 = scmp.ne.s32.totalorder %s82, %s84
      %p88 = scmp.eq.s32.totalorder %s22, 0
      %p89 = por %p87, %p88
      %p90 = scmp.ne.s32.totalorder %s82, %s84
      %p91 = scmp.eq.s32.totalorder %s27, 1
      %p92 = por %p90, %p91
      %p93 = scmp.ne.s32.totalorder %s84, %s85
      %p94 = scmp.eq.s32.totalorder %s27, 0
      %p95 = por %p93, %p94
      %p96 = scmp.ne.s32.totalorder %s84, %s85
      %p97 = scmp.eq.s32.totalorder %s28, 1
      %p98 = por %p96, %p97
      %p100 = scmp.ne.s32.totalorder %s85, %s99
      %p101 = scmp.eq.s32.totalorder %s28, 0
      %p102 = por %p100, %p101
      %s104 = sadd.s32 %s103, 1
      %p107 = scmp.eq.s32.totalorder %s22, 1
      %p108 = scmp.ne.s32.totalorder %s103, %s105
      %p109 = scmp.eq.s32.totalorder %s22, 0
      %p110 = por %p108, %p109
      %p111 = scmp.ne.s32.totalorder %s103, %s105
      %p112 = scmp.eq.s32.totalorder %s27, 1
      %p113 = por %p111, %p112
      %p114 = scmp.ne.s32.totalorder %s105, %s106
      %p115 = scmp.eq.s32.totalorder %s27, 0
      %p116 = por %p114, %p115
      %p117 = scmp.ne.s32.totalorder %s105, %s106
      %p118 = scmp.eq.s32.totalorder %s28, 1
      %p119 = por %p117, %p118
      %p121 = scmp.ne.s32.totalorder %s106, %s120
      %p122 = scmp.eq.s32.totalorder %s28, 0
      %p123 = por %p121, %p122
      %s125 = sadd.s32 %s124, 1
      %p128 = scmp.eq.s32.totalorder %s22, 1
      %p129 = scmp.ne.s32.totalorder %s124, %s126
      %p130 = scmp.eq.s32.totalorder %s22, 0
      %p131 = por %p129, %p130
      %p132 = scmp.ne.s32.totalorder %s124, %s126
      %p133 = scmp.eq.s32.totalorder %s27, 1
      %p134 = por %p132, %p133
      %p135 = scmp.ne.s32.totalorder %s126, %s127
      %p136 = scmp.eq.s32.totalorder %s27, 0
      %p137 = por %p135, %p136
      %p138 = scmp.ne.s32.totalorder %s126, %s127
      %p139 = scmp.eq.s32.totalorder %s28, 1
      %p140 = por %p138, %p139
      %p142 = scmp.ne.s32.totalorder %s127, %s141
      %p143 = scmp.eq.s32.totalorder %s28, 0
      %p144 = por %p142, %p143
      %s146 = sadd.s32 %s145, 1
      %p149 = scmp.eq.s32.totalorder %s22, 1
      %p150 = scmp.ne.s32.totalorder %s145, %s147
      %p151 = scmp.eq.s32.totalorder %s22, 0
      %p152 = por %p150, %p151
      %p153 = scmp.ne.s32.totalorder %s145, %s147
      %p154 = scmp.eq.s32.totalorder %s27, 1
      %p155 = por %p153, %p154
      %p156 = scmp.ne.s32.totalorder %s147, %s148
      %p157 = scmp.eq.s32.totalorder %s27, 0
      %p158 = por %p156, %p157
      %p159 = scmp.ne.s32.totalorder %s147, %s148
      %p160 = scmp.eq.s32.totalorder %s28, 1
      %p161 = por %p159, %p160
      %p163 = scmp.ne.s32.totalorder %s148, %s162
      %p164 = scmp.eq.s32.totalorder %s28, 0
      %p165 = por %p163, %p164
      %s166 = ssub.s32 %s22, %s29
      %p167 = scmp.eq.s32.totalorder %s166, 0
      %s169 = sadd.s32 %s168, 1
      %s170 = scalar_select %p167, %s168, %s169
      %p173 = pneg %p167
      %p174 = scmp.eq.s32.totalorder %s22, 1
      %p175 = por %p173, %p174
      %p176 = scmp.ne.s32.totalorder %s168, %s171
      %p177 = scmp.eq.s32.totalorder %s22, 0
      %p178 = por %p176, %p177
      %p179 = scmp.ne.s32.totalorder %s168, %s171
      %p180 = scmp.eq.s32.totalorder %s27, 1
      %p181 = por %p179, %p180
      %p182 = scmp.ne.s32.totalorder %s171, %s172
      %p183 = scmp.eq.s32.totalorder %s27, 0
      %p184 = por %p182, %p183
      %p185 = scmp.ne.s32.totalorder %s171, %s172
      %p186 = scmp.eq.s32.totalorder %s28, 1
      %p187 = por %p185, %p186
      %p189 = scmp.ne.s32.totalorder %s172, %s188
      %p190 = scmp.eq.s32.totalorder %s28, 0
      %p191 = por %p189, %p190
      %p192 = scmp.le.s32.totalorder 1, %s22
      %p193 = scmp.lt.s32.totalorder %s22, 3
      %p194 = pnand %p192, %p193
      %p195 = pneg %p194
      // Predicated region
      $region9: #{tpu_custom_call.1} parent=5 // pred_check
        _
      $region10: #{tpu_custom_call.1} parent=5 // pred_check_branch
        %197 = sbr.rel (%p194) target = $region12
      $region11: #{tpu_custom_call.1} parent=5 // pred_region
        %s198 = ssub.s32 %s22, 1
        // Predicated region
        $region13: #{tpu_custom_call.1} parent=11 // pred_check
          %p199 = pneg %p95
        $region14: #{tpu_custom_call.1} parent=11 // pred_check_branch
          %201 = sbr.rel (%p199) target = $region16
        $region15: #{tpu_custom_call.1} parent=11 // pred_region
          %s203 = ssub.s32 2048, 2048
          %204 = vsyncadd [#allocation6], %s203
          %s205 = sshll.u32 [#allocation7], 4
          %s206 = int_to_ptr.vmem [resolvable:$true] %s205
          %211 = dma.hbm_to_vmem [thread:$0]  %s2, 2048, %s206, [#allocation6], 128, 128, 8
        $region16: #{tpu_custom_call.1} parent=11 // pred_fallthru
          _
        // Predicated region
        $region17: #{tpu_custom_call.1} parent=11 // pred_check
          %p212 = pneg %p116
        $region18: #{tpu_custom_call.1} parent=11 // pred_check_branch
          %214 = sbr.rel (%p212) target = $region20
        $region19: #{tpu_custom_call.1} parent=11 // pred_region
          %s216 = ssub.s32 4096, 4096
          %217 = vsyncadd [#allocation9], %s216
          %s218 = sshll.u32 [#allocation8], 4
          %s219 = int_to_ptr.vmem [resolvable:$true] %s218
          %224 = dma.hbm_to_vmem [thread:$0]  %s3, 4096, %s219, [#allocation9], 256, 256, 16
        $region20: #{tpu_custom_call.1} parent=11 // pred_fallthru
          _
        // Predicated region
        $region21: #{tpu_custom_call.1} parent=11 // pred_check
          %p225 = pneg %p137
        $region22: #{tpu_custom_call.1} parent=11 // pred_check_branch
          %227 = sbr.rel (%p225) target = $region24
        $region23: #{tpu_custom_call.1} parent=11 // pred_region
          %s229 = ssub.s32 2048, 2048
          %230 = vsyncadd [#allocation9], %s229
          %s231 = sshll.u32 [#allocation10], 4
          %s232 = int_to_ptr.vmem [resolvable:$true] %s231
          %237 = dma.hbm_to_vmem [thread:$0]  %s4, 2048, %s232, [#allocation9], 128, 128, 8
        $region24: #{tpu_custom_call.1} parent=11 // pred_fallthru
          _
        // Predicated region
        $region25: #{tpu_custom_call.1} parent=11 // pred_check
          %p238 = pneg %p158
        $region26: #{tpu_custom_call.1} parent=11 // pred_check_branch
          %240 = sbr.rel (%p238) target = $region28
        $region27: #{tpu_custom_call.1} parent=11 // pred_region
          _
        $region28: #{tpu_custom_call.1} parent=11 // pred_fallthru
          _
      $region12: #{tpu_custom_call.1} parent=5 // pred_fallthru
        _
      %p241 = scmp.lt.s32.totalorder %s22, 2
      // Predicated region
      $region29: #{tpu_custom_call.1} parent=5 // pred_check
        %p242 = pneg %p241
      $region30: #{tpu_custom_call.1} parent=5 // pred_check_branch
        %244 = sbr.rel (%p242) target = $region32
      $region31: #{tpu_custom_call.1} parent=5 // pred_region
        // Predicated region
        $region33: #{tpu_custom_call.1} parent=31 // pred_check
          %p245 = pneg %p42
        $region34: #{tpu_custom_call.1} parent=31 // pred_check_branch
          %247 = sbr.rel (%p245) target = $region36
        $region35: #{tpu_custom_call.1} parent=31 // pred_region
          %s248 = sand.u32 %s32, 1
          %s249 = scalar_lea.sflag [#allocation3], %s248
          %s250 = sand.u32 %s32, 1
          %s251 = smul.addr %s250, 16
          %s252 = scalar_lea.vmem [#allocation2], %s251
          %s253 = smul.u32 2, %s22
          %s255 = ssub.s32 256, 256
          %256 = vsyncadd %s249, %s255
          %s257 = smul.addr %s253, 128
          %s258 = scalar_lea.hbm %s0, %s257
          %s259 = sshll.u32 %s252, 4
          %s260 = int_to_ptr.vmem [resolvable:$true] %s259
          %265 = dma.hbm_to_vmem [thread:$0]  %s258, 256, %s260, %s249, 128, 128, 8
        $region36: #{tpu_custom_call.1} parent=31 // pred_fallthru
          _
        // Predicated region
        $region37: #{tpu_custom_call.1} parent=31 // pred_check
          %p266 = pneg %p68
        $region38: #{tpu_custom_call.1} parent=31 // pred_check_branch
          %268 = sbr.rel (%p266) target = $region40
        $region39: #{tpu_custom_call.1} parent=31 // pred_region
          %s269 = sand.u32 %s22, 1
          %s270 = scalar_lea.sflag [#allocation6], %s269
          %s271 = sand.u32 %s58, 1
          %s272 = smul.addr %s271, 16
          %s273 = scalar_lea.vmem [#allocation5], %s272
          %s274 = smul.u32 2, %s22
          %s276 = ssub.s32 256, 256
          %277 = vsyncadd %s270, %s276
          %s278 = smul.addr %s274, 128
          %s279 = scalar_lea.hbm %s1, %s278
          %s280 = sshll.u32 %s273, 4
          %s281 = int_to_ptr.vmem [resolvable:$true] %s280
          %286 = dma.hbm_to_vmem [thread:$0]  %s279, 256, %s281, %s270, 128, 128, 8
        $region40: #{tpu_custom_call.1} parent=31 // pred_fallthru
          _
      $region32: #{tpu_custom_call.1} parent=5 // pred_fallthru
        _
      %p287 = scmp.le.s32.totalorder 1, %s22
      %p288 = scmp.lt.s32.totalorder %s22, 3
      %p289 = pnand %p287, %p288
      %p290 = pneg %p289
      // Predicated region
      $region41: #{tpu_custom_call.1} parent=5 // pred_check
        _
      $region42: #{tpu_custom_call.1} parent=5 // pred_check_branch
        %292 = sbr.rel (%p289) target = $region44
      $region43: #{tpu_custom_call.1} parent=5 // pred_region
        %s293 = ssub.s32 %s22, 1
        %s294 = sand.u32 %s35, 1
        %s295 = scalar_lea.sflag [#allocation3], %s294
        %s296 = sand.u32 %s35, 1
        %s297 = smul.addr %s296, 16
        %s298 = scalar_lea.vmem [#allocation2], %s297
        // Predicated region
        $region45: #{tpu_custom_call.1} parent=43 // pred_check
          %p299 = pneg %p48
        $region46: #{tpu_custom_call.1} parent=43 // pred_check_branch
          %301 = sbr.rel (%p299) target = $region48
        $region47: #{tpu_custom_call.1} parent=43 // pred_region
          %302 = dma.done %s295, 256
        $region48: #{tpu_custom_call.1} parent=43 // pred_fallthru
          _
        %s303 = sand.u32 %s27, 1
        %s304 = scalar_lea.sflag [#allocation6], %s303
        %s305 = sand.u32 %s61, 1
        %s306 = smul.addr %s305, 16
        %s307 = scalar_lea.vmem [#allocation5], %s306
        // Predicated region
        $region49: #{tpu_custom_call.1} parent=43 // pred_check
          %p308 = pneg %p74
        $region50: #{tpu_custom_call.1} parent=43 // pred_check_branch
          %310 = sbr.rel (%p308) target = $region52
        $region51: #{tpu_custom_call.1} parent=43 // pred_region
          %311 = dma.done %s304, 256
        $region52: #{tpu_custom_call.1} parent=43 // pred_fallthru
          _
        // Predicated region
        $region53: #{tpu_custom_call.1} parent=43 // pred_check
          %p312 = pneg %p95
        $region54: #{tpu_custom_call.1} parent=43 // pred_check_branch
          %314 = sbr.rel (%p312) target = $region56
        $region55: #{tpu_custom_call.1} parent=43 // pred_region
          %315 = dma.done [#allocation6], 2048
        $region56: #{tpu_custom_call.1} parent=43 // pred_fallthru
          _
        // Predicated region
        $region57: #{tpu_custom_call.1} parent=43 // pred_check
          %p316 = pneg %p116
        $region58: #{tpu_custom_call.1} parent=43 // pred_check_branch
          %318 = sbr.rel (%p316) target = $region60
        $region59: #{tpu_custom_call.1} parent=43 // pred_region
          %319 = dma.done [#allocation9], 4096
        $region60: #{tpu_custom_call.1} parent=43 // pred_fallthru
          _
        // Predicated region
        $region61: #{tpu_custom_call.1} parent=43 // pred_check
          %p320 = pneg %p137
        $region62: #{tpu_custom_call.1} parent=43 // pred_check_branch
          %322 = sbr.rel (%p320) target = $region64
        $region63: #{tpu_custom_call.1} parent=43 // pred_region
          %323 = dma.done [#allocation9], 2048
        $region64: #{tpu_custom_call.1} parent=43 // pred_fallthru
          _
        %s324 = sand.u32 %s35, 1
        %s325 = scalar_lea.sflag [#allocation3], %s324
        %s326 = sand.u32 %s35, 1
        %s327 = smul.addr %s326, 16
        %s328 = scalar_lea.vmem [#allocation2], %s327
        %p329 = pneg %p48
        %p330 = pneg %p45
        %s331 = sand.u32 %s27, 1
        %s332 = scalar_lea.sflag [#allocation6], %s331
        %s333 = sand.u32 %s61, 1
        %s334 = smul.addr %s333, 16
        %s335 = scalar_lea.vmem [#allocation5], %s334
        %p336 = pneg %p74
        %p337 = pneg %p71
        %p338 = pneg %p95
        %p339 = pneg %p92
        %p340 = pneg %p116
        %p341 = pneg %p113
        %p342 = pneg %p137
        %p343 = pneg %p134
        %p344 = pneg %p158
        %p345 = pneg %p155
        %p346 = pneg %p184
        %p347 = pneg %p181
        %s348 = sand.u32 %s171, 1
        %s349 = scalar_lea.sflag [#allocation4], %s348
        %s350 = sand.u32 %s171, 1
        %s351 = smul.addr %s350, 16
        %s352 = scalar_lea.vmem [#allocation11], %s351
        %s353 = smul.u32 2, %s27
        %s354 = smul.u32 2, %s27
        %s355 = smul.u32 2, %s27
        %v356 = vld [vmem:[%s298] sm:$0xff]
        %v357 = vld [vmem:[%s298 + $0x8] sm:$0xff]
        %v358 = vld [vmem:[%s307] sm:$0xff]
        %v359 = vld [vmem:[%s307 + $0x8] sm:$0xff]
        %v360 = vld [vmem:[#allocation7] sm:$0xff]
        %v361 = vld [vmem:[#allocation7 + $0x8] sm:$0xff]
        %v362 = vld [vmem:[#allocation7 + $0x10] sm:$0xff]
        %v363 = vld [vmem:[#allocation7 + $0x18] sm:$0xff]
        %v364 = vld [vmem:[#allocation7 + $0x20] sm:$0xff]
        %v365 = vld [vmem:[#allocation7 + $0x28] sm:$0xff]
        %v366 = vld [vmem:[#allocation7 + $0x30] sm:$0xff]
        %v367 = vld [vmem:[#allocation7 + $0x38] sm:$0xff]
        %v368 = vld [vmem:[#allocation7 + $0x40] sm:$0xff]
        %v369 = vld [vmem:[#allocation7 + $0x48] sm:$0xff]
        %v370 = vld [vmem:[#allocation7 + $0x50] sm:$0xff]
        %v371 = vld [vmem:[#allocation7 + $0x58] sm:$0xff]
        %v372 = vld [vmem:[#allocation7 + $0x60] sm:$0xff]
        %v373 = vld [vmem:[#allocation7 + $0x68] sm:$0xff]
        %v374 = vld [vmem:[#allocation7 + $0x70] sm:$0xff]
        %v375 = vld [vmem:[#allocation7 + $0x78] sm:$0xff]
        %376 = vmatprep.subr.mxu0 0.0
        %377 = vmatpush1.msra.mxu0 %v375
        %378 = vmatprep.subr.mxu0 0.0
        %379 = vmatpush1.msra.mxu0 %v374
        %380 = vmatprep.subr.mxu0 0.0
        %381 = vmatpush1.msra.mxu0 %v373
        %382 = vmatprep.subr.mxu0 0.0
        %383 = vmatpush1.msra.mxu0 %v372
        %384 = vmatprep.subr.mxu0 0.0
        %385 = vmatpush1.msra.mxu0 %v371
        %386 = vmatprep.subr.mxu0 0.0
        %387 = vmatpush1.msra.mxu0 %v370
        %388 = vmatprep.subr.mxu0 0.0
        %389 = vmatpush1.msra.mxu0 %v369
        %390 = vmatprep.subr.mxu0 0.0
        %391 = vmatpush1.msra.mxu0 %v368
        %392 = vmatprep.subr.mxu0 0.0
        %393 = vmatpush1.msra.mxu0 %v367
        %394 = vmatprep.subr.mxu0 0.0
        %395 = vmatpush1.msra.mxu0 %v366
        %396 = vmatprep.subr.mxu0 0.0
        %397 = vmatpush1.msra.mxu0 %v365
        %398 = vmatprep.subr.mxu0 0.0
        %399 = vmatpush1.msra.mxu0 %v364
        %400 = vmatprep.subr.mxu0 0.0
        %401 = vmatpush1.msra.mxu0 %v363
        %402 = vmatprep.subr.mxu0 0.0
        %403 = vmatpush1.msra.mxu0 %v362
        %404 = vmatprep.subr.mxu0 0.0
        %405 = vmatpush1.msra.mxu0 %v361
        %406 = vmatprep.subr.mxu0 0.0
        %407 = vmatpush1.msra.mxu0 %v360
        %408 = vmatprep.subr.mxu0 0.0
        %409 = vmatpush2.msra.mxu0 0.0
        %410 = vmatprep.subr.mxu0 0.0
        %411 = vmatpush2.msra.mxu0 0.0
        %412 = vmatprep.subr.mxu0 0.0
        %413 = vmatpush2.msra.mxu0 0.0
        %414 = vmatprep.subr.mxu0 0.0
        %415 = vmatpush2.msra.mxu0 0.0
        %416 = vmatprep.subr.mxu0 0.0
        %417 = vmatpush2.msra.mxu0 0.0
        %418 = vmatprep.subr.mxu0 0.0
        %419 = vmatpush2.msra.mxu0 0.0
        %420 = vmatprep.subr.mxu0 0.0
        %421 = vmatpush2.msra.mxu0 0.0
        %422 = vmatprep.subr.mxu0 0.0
        %423 = vmatpush2.msra.mxu0 0.0
        %424 = vmatprep.subr.mxu0 0.0
        %425 = vmatpush2.msra.mxu0 0.0
        %426 = vmatprep.subr.mxu0 0.0
        %427 = vmatpush2.msra.mxu0 0.0
        %428 = vmatprep.subr.mxu0 0.0
        %429 = vmatpush2.msra.mxu0 0.0
        %430 = vmatprep.subr.mxu0 0.0
        %431 = vmatpush2.msra.mxu0 0.0
        %432 = vmatprep.subr.mxu0 0.0
        %433 = vmatpush2.msra.mxu0 0.0
        %434 = vmatprep.subr.mxu0 0.0
        %435 = vmatpush2.msra.mxu0 0.0
        %436 = vmatprep.subr.mxu0 0.0
        %437 = vmatpush2.msra.mxu0 0.0
        %438 = vmatprep.subr.mxu0 0.0
        %439 = vmatpush2.msra.mxu0 0.0
        %440 = vmatprep.mubr.f32.mxu0 0.0
        %441 = vmatmul.mubr.f32.gmra.mxu0 %v356
        %v442 = vpop.f32.mrf.mxu0
        %v443 = vadd.f32 0.0, %v442
        %v444 = vpop.f32.mrf.mxu0
        %445 = vmatprep.mubr.f32.mxu0 0.0
        %446 = vmatmul.mubr.f32.gmra.mxu0 %v357
        %v447 = vpop.f32.mrf.mxu0
        %v448 = vadd.f32 0.0, %v447
        %v449 = vpop.f32.mrf.mxu0
        %450 = vdwg.mxu0
        %v451 = vld [vmem:[#allocation8] sm:$0xff]
        %v452 = vld [vmem:[#allocation8 + $0x8] sm:$0xff]
        %v453 = vld [vmem:[#allocation8 + $0x10] sm:$0xff]
        %v454 = vld [vmem:[#allocation8 + $0x18] sm:$0xff]
        %v455 = vld [vmem:[#allocation8 + $0x20] sm:$0xff]
        %v456 = vld [vmem:[#allocation8 + $0x28] sm:$0xff]
        %v457 = vld [vmem:[#allocation8 + $0x30] sm:$0xff]
        %v458 = vld [vmem:[#allocation8 + $0x38] sm:$0xff]
        %v459 = vld [vmem:[#allocation8 + $0x40] sm:$0xff]
        %v460 = vld [vmem:[#allocation8 + $0x48] sm:$0xff]
        %v461 = vld [vmem:[#allocation8 + $0x50] sm:$0xff]
        %v462 = vld [vmem:[#allocation8 + $0x58] sm:$0xff]
        %v463 = vld [vmem:[#allocation8 + $0x60] sm:$0xff]
        %v464 = vld [vmem:[#allocation8 + $0x68] sm:$0xff]
        %v465 = vld [vmem:[#allocation8 + $0x70] sm:$0xff]
        %v466 = vld [vmem:[#allocation8 + $0x78] sm:$0xff]
        %v467 = vld [vmem:[#allocation8 + $0x80] sm:$0xff]
        %v468 = vld [vmem:[#allocation8 + $0x88] sm:$0xff]
        %v469 = vld [vmem:[#allocation8 + $0x90] sm:$0xff]
        %v470 = vld [vmem:[#allocation8 + $0x98] sm:$0xff]
        %v471 = vld [vmem:[#allocation8 + $0xa0] sm:$0xff]
        %v472 = vld [vmem:[#allocation8 + $0xa8] sm:$0xff]
        %v473 = vld [vmem:[#allocation8 + $0xb0] sm:$0xff]
        %v474 = vld [vmem:[#allocation8 + $0xb8] sm:$0xff]
        %v475 = vld [vmem:[#allocation8 + $0xc0] sm:$0xff]
        %v476 = vld [vmem:[#allocation8 + $0xc8] sm:$0xff]
        %v477 = vld [vmem:[#allocation8 + $0xd0] sm:$0xff]
        %v478 = vld [vmem:[#allocation8 + $0xd8] sm:$0xff]
        %v479 = vld [vmem:[#allocation8 + $0xe0] sm:$0xff]
        %v480 = vld [vmem:[#allocation8 + $0xe8] sm:$0xff]
        %v481 = vld [vmem:[#allocation8 + $0xf0] sm:$0xff]
        %v482 = vld [vmem:[#allocation8 + $0xf8] sm:$0xff]
        %483 = vmatprep.subr.mxu0 %v482
        %484 = vmatpush1.msra.mxu0 %v481
        %485 = vmatprep.subr.mxu0 %v480
        %486 = vmatpush1.msra.mxu0 %v479
        %487 = vmatprep.subr.mxu0 %v478
        %488 = vmatpush1.msra.mxu0 %v477
        %489 = vmatprep.subr.mxu0 %v476
        %490 = vmatpush1.msra.mxu0 %v475
        %491 = vmatprep.subr.mxu0 %v474
        %492 = vmatpush1.msra.mxu0 %v473
        %493 = vmatprep.subr.mxu0 %v472
        %494 = vmatpush1.msra.mxu0 %v471
        %495 = vmatprep.subr.mxu0 %v470
        %496 = vmatpush1.msra.mxu0 %v469
        %497 = vmatprep.subr.mxu0 %v468
        %498 = vmatpush1.msra.mxu0 %v467
        %499 = vmatprep.subr.mxu0 %v466
        %500 = vmatpush1.msra.mxu0 %v465
        %501 = vmatprep.subr.mxu0 %v464
        %502 = vmatpush1.msra.mxu0 %v463
        %503 = vmatprep.subr.mxu0 %v462
        %504 = vmatpush1.msra.mxu0 %v461
        %505 = vmatprep.subr.mxu0 %v460
        %506 = vmatpush1.msra.mxu0 %v459
        %507 = vmatprep.subr.mxu0 %v458
        %508 = vmatpush1.msra.mxu0 %v457
        %509 = vmatprep.subr.mxu0 %v456
        %510 = vmatpush1.msra.mxu0 %v455
        %511 = vmatprep.subr.mxu0 %v454
        %512 = vmatpush1.msra.mxu0 %v453
        %513 = vmatprep.subr.mxu0 %v452
        %514 = vmatpush1.msra.mxu0 %v451
        %515 = vmatprep.subr.mxu0 0.0
        %516 = vmatpush2.msra.mxu0 0.0
        %517 = vmatprep.subr.mxu0 0.0
        %518 = vmatpush2.msra.mxu0 0.0
        %519 = vmatprep.subr.mxu0 0.0
        %520 = vmatpush2.msra.mxu0 0.0
        %521 = vmatprep.subr.mxu0 0.0
        %522 = vmatpush2.msra.mxu0 0.0
        %523 = vmatprep.subr.mxu0 0.0
        %524 = vmatpush2.msra.mxu0 0.0
        %525 = vmatprep.subr.mxu0 0.0
        %526 = vmatpush2.msra.mxu0 0.0
        %527 = vmatprep.subr.mxu0 0.0
        %528 = vmatpush2.msra.mxu0 0.0
        %529 = vmatprep.subr.mxu0 0.0
        %530 = vmatpush2.msra.mxu0 0.0
        %531 = vmatprep.subr.mxu0 0.0
        %532 = vmatpush2.msra.mxu0 0.0
        %533 = vmatprep.subr.mxu0 0.0
        %534 = vmatpush2.msra.mxu0 0.0
        %535 = vmatprep.subr.mxu0 0.0
        %536 = vmatpush2.msra.mxu0 0.0
        %537 = vmatprep.subr.mxu0 0.0
        %538 = vmatpush2.msra.mxu0 0.0
        %539 = vmatprep.subr.mxu0 0.0
        %540 = vmatpush2.msra.mxu0 0.0
        %541 = vmatprep.subr.mxu0 0.0
        %542 = vmatpush2.msra.mxu0 0.0
        %543 = vmatprep.subr.mxu0 0.0
        %544 = vmatpush2.msra.mxu0 0.0
        %545 = vmatprep.subr.mxu0 0.0
        %546 = vmatpush2.msra.mxu0 0.0
        %547 = vmatprep.mubr.f32.mxu0 0.0
        %548 = vmatmul.mubr.f32.gmra.mxu0 %v358
        %v549 = vpop.f32.mrf.mxu0
        %v550 = vadd.f32 0.0, %v549
        %v551 = vpop.f32.mrf.mxu0
        %v552 = vadd.f32 0.0, %v551
        %553 = vmatprep.mubr.f32.mxu0 0.0
        %554 = vmatmul.mubr.f32.gmra.mxu0 %v359
        %v555 = vpop.f32.mrf.mxu0
        %v556 = vadd.f32 0.0, %v555
        %v557 = vpop.f32.mrf.mxu0
        %v558 = vadd.f32 0.0, %v557
        %559 = vdwg.mxu0
        %vm560 = vcmask 261120
        %v562 = vsel %vm560, %v443, 0
        %v565 = vsel %vm560, %v550, 0
        %567 = vmatprep.subr.mxu0 0.0
        %568 = vmatpush1.xpose.msra.mxu0 0.0
        %569 = vmatprep.subr.mxu0 0.0
        %570 = vmatpush1.xpose.msra.mxu0 0.0
        %571 = vmatprep.subr.mxu0 0.0
        %572 = vmatpush1.xpose.msra.mxu0 0.0
        %573 = vmatprep.subr.mxu0 0.0
        %574 = vmatpush1.xpose.msra.mxu0 0.0
        %575 = vmatprep.subr.mxu0 0.0
        %576 = vmatpush1.xpose.msra.mxu0 0.0
        %577 = vmatprep.subr.mxu0 0.0
        %578 = vmatpush1.xpose.msra.mxu0 0.0
        %579 = vmatprep.subr.mxu0 0.0
        %580 = vmatpush1.xpose.msra.mxu0 0.0
        %581 = vmatprep.subr.mxu0 0.0
        %582 = vmatpush1.xpose.msra.mxu0 0.0
        %583 = vmatprep.subr.mxu0 0.0
        %584 = vmatpush1.xpose.msra.mxu0 0.0
        %585 = vmatprep.subr.mxu0 0.0
        %586 = vmatpush1.xpose.msra.mxu0 0.0
        %587 = vmatprep.subr.mxu0 0.0
        %588 = vmatpush1.xpose.msra.mxu0 0.0
        %589 = vmatprep.subr.mxu0 0.0
        %590 = vmatpush1.xpose.msra.mxu0 0.0
        %591 = vmatprep.subr.mxu0 0.0
        %592 = vmatpush1.xpose.msra.mxu0 0.0
        %593 = vmatprep.subr.mxu0 0.0
        %594 = vmatpush1.xpose.msra.mxu0 0.0
        %595 = vmatprep.subr.mxu0 0.0
        %596 = vmatpush1.xpose.msra.mxu0 0.0
        %597 = vmatprep.subr.mxu0 0.0
        %598 = vmatpush1.xpose.msra.mxu0 %v565
        %599 = vmatprep.subr.mxu0 0.0
        %600 = vmatpush2.xpose.msra.mxu0 0.0
        %601 = vmatprep.subr.mxu0 0.0
        %602 = vmatpush2.xpose.msra.mxu0 0.0
        %603 = vmatprep.subr.mxu0 0.0
        %604 = vmatpush2.xpose.msra.mxu0 0.0
        %605 = vmatprep.subr.mxu0 0.0
        %606 = vmatpush2.xpose.msra.mxu0 0.0
        %607 = vmatprep.subr.mxu0 0.0
        %608 = vmatpush2.xpose.msra.mxu0 0.0
        %609 = vmatprep.subr.mxu0 0.0
        %610 = vmatpush2.xpose.msra.mxu0 0.0
        %611 = vmatprep.subr.mxu0 0.0
        %612 = vmatpush2.xpose.msra.mxu0 0.0
        %613 = vmatprep.subr.mxu0 0.0
        %614 = vmatpush2.xpose.msra.mxu0 0.0
        %615 = vmatprep.subr.mxu0 0.0
        %616 = vmatpush2.xpose.msra.mxu0 0.0
        %617 = vmatprep.subr.mxu0 0.0
        %618 = vmatpush2.xpose.msra.mxu0 0.0
        %619 = vmatprep.subr.mxu0 0.0
        %620 = vmatpush2.xpose.msra.mxu0 0.0
        %621 = vmatprep.subr.mxu0 0.0
        %622 = vmatpush2.xpose.msra.mxu0 0.0
        %623 = vmatprep.subr.mxu0 0.0
        %624 = vmatpush2.xpose.msra.mxu0 0.0
        %625 = vmatprep.subr.mxu0 0.0
        %626 = vmatpush2.xpose.msra.mxu0 0.0
        %627 = vmatprep.subr.mxu0 0.0
        %628 = vmatpush2.xpose.msra.mxu0 0.0
        %629 = vmatprep.subr.mxu0 0.0
        %630 = vmatpush2.xpose.msra.mxu0 0.0
        %631 = vmatprep.mubr.f32.mxu0 0.0
        %632 = vmatmul.mubr.f32.gmra.mxu0 %v562
        %v633 = vpop.f32.mrf.mxu0
        %v634 = vadd.f32 0.0, %v633
        %v635 = vpop.f32.mrf.mxu0
        %636 = vdwg.mxu0
        %v638 = vsel %vm560, %v448, 0
        %v641 = vsel %vm560, %v556, 0
        %643 = vmatprep.subr.mxu0 0.0
        %644 = vmatpush1.xpose.msra.mxu0 0.0
        %645 = vmatprep.subr.mxu0 0.0
        %646 = vmatpush1.xpose.msra.mxu0 0.0
        %647 = vmatprep.subr.mxu0 0.0
        %648 = vmatpush1.xpose.msra.mxu0 0.0
        %649 = vmatprep.subr.mxu0 0.0
        %650 = vmatpush1.xpose.msra.mxu0 0.0
        %651 = vmatprep.subr.mxu0 0.0
        %652 = vmatpush1.xpose.msra.mxu0 0.0
        %653 = vmatprep.subr.mxu0 0.0
        %654 = vmatpush1.xpose.msra.mxu0 0.0
        %655 = vmatprep.subr.mxu0 0.0
        %656 = vmatpush1.xpose.msra.mxu0 0.0
        %657 = vmatprep.subr.mxu0 0.0
        %658 = vmatpush1.xpose.msra.mxu0 0.0
        %659 = vmatprep.subr.mxu0 0.0
        %660 = vmatpush1.xpose.msra.mxu0 0.0
        %661 = vmatprep.subr.mxu0 0.0
        %662 = vmatpush1.xpose.msra.mxu0 0.0
        %663 = vmatprep.subr.mxu0 0.0
        %664 = vmatpush1.xpose.msra.mxu0 0.0
        %665 = vmatprep.subr.mxu0 0.0
        %666 = vmatpush1.xpose.msra.mxu0 0.0
        %667 = vmatprep.subr.mxu0 0.0
        %668 = vmatpush1.xpose.msra.mxu0 0.0
        %669 = vmatprep.subr.mxu0 0.0
        %670 = vmatpush1.xpose.msra.mxu0 0.0
        %671 = vmatprep.subr.mxu0 0.0
        %672 = vmatpush1.xpose.msra.mxu0 0.0
        %673 = vmatprep.subr.mxu0 0.0
        %674 = vmatpush1.xpose.msra.mxu0 %v641
        %675 = vmatprep.subr.mxu0 0.0
        %676 = vmatpush2.xpose.msra.mxu0 0.0
        %677 = vmatprep.subr.mxu0 0.0
        %678 = vmatpush2.xpose.msra.mxu0 0.0
        %679 = vmatprep.subr.mxu0 0.0
        %680 = vmatpush2.xpose.msra.mxu0 0.0
        %681 = vmatprep.subr.mxu0 0.0
        %682 = vmatpush2.xpose.msra.mxu0 0.0
        %683 = vmatprep.subr.mxu0 0.0
        %684 = vmatpush2.xpose.msra.mxu0 0.0
        %685 = vmatprep.subr.mxu0 0.0
        %686 = vmatpush2.xpose.msra.mxu0 0.0
        %687 = vmatprep.subr.mxu0 0.0
        %688 = vmatpush2.xpose.msra.mxu0 0.0
        %689 = vmatprep.subr.mxu0 0.0
        %690 = vmatpush2.xpose.msra.mxu0 0.0
        %691 = vmatprep.subr.mxu0 0.0
        %692 = vmatpush2.xpose.msra.mxu0 0.0
        %693 = vmatprep.subr.mxu0 0.0
        %694 = vmatpush2.xpose.msra.mxu0 0.0
        %695 = vmatprep.subr.mxu0 0.0
        %696 = vmatpush2.xpose.msra.mxu0 0.0
        %697 = vmatprep.subr.mxu0 0.0
        %698 = vmatpush2.xpose.msra.mxu0 0.0
        %699 = vmatprep.subr.mxu0 0.0
        %700 = vmatpush2.xpose.msra.mxu0 0.0
        %701 = vmatprep.subr.mxu0 0.0
        %702 = vmatpush2.xpose.msra.mxu0 0.0
        %703 = vmatprep.subr.mxu0 0.0
        %704 = vmatpush2.xpose.msra.mxu0 0.0
        %705 = vmatprep.subr.mxu0 0.0
        %706 = vmatpush2.xpose.msra.mxu0 0.0
        %707 = vmatprep.mubr.f32.mxu0 0.0
        %708 = vmatmul.mubr.f32.gmra.mxu0 %v638
        %v709 = vpop.f32.mrf.mxu0
        %v710 = vadd.f32 0.0, %v709
        %v711 = vpop.f32.mrf.mxu0
        %712 = vdwg.mxu0
        %vm713 = vcmask 64512
        %v714 = vsel %vm713, %v634, -inf
        %715 = vmax.xlane.f32.xlu0 %v714
        %v716 = vpop.xlane.xlu0 %715
        %v717 = vsel %vm713, %v710, -inf
        %718 = vmax.xlane.f32.xlu0 %v717
        %v719 = vpop.xlane.xlu0 %718
        %v720 = vsub.f32 %v634, %v716
        %v721 = vsub.f32 %v710, %v719
        %v722 = vmul.f32 %v720, 1.442695
        %v723 = vpow.pop %v722
        %v724 = vmul.f32 %v721, 1.442695
        %v725 = vpow.pop %v724
        %v726 = vsel %vm713, %v723, 0.0
        %727 = vadd.xlane.f32.xlu0 %v726
        %v728 = vpop.xlane.xlu0 %727
        %v729 = vsel %vm713, %v725, 0.0
        %730 = vadd.xlane.f32.xlu0 %v729
        %v731 = vpop.xlane.xlu0 %730
        %v732 = vrcp.pop %v728
        %v733 = vrcp.pop %v731
        %v734 = vmul.f32 %v723, %v732
        %v735 = vmul.f32 %v725, %v733
        %v737 = vsel %vm713, %v734, 0
        %739 = vmatprep.subr.mxu0 0.0
        %740 = vmatpush1.msra.mxu0 0.0
        %741 = vmatprep.subr.mxu0 0.0
        %742 = vmatpush1.msra.mxu0 0.0
        %743 = vmatprep.subr.mxu0 0.0
        %744 = vmatpush1.msra.mxu0 0.0
        %745 = vmatprep.subr.mxu0 0.0
        %746 = vmatpush1.msra.mxu0 0.0
        %747 = vmatprep.subr.mxu0 0.0
        %748 = vmatpush1.msra.mxu0 0.0
        %749 = vmatprep.subr.mxu0 0.0
        %750 = vmatpush1.msra.mxu0 0.0
        %751 = vmatprep.subr.mxu0 0.0
        %752 = vmatpush1.msra.mxu0 0.0
        %753 = vmatprep.subr.mxu0 0.0
        %754 = vmatpush1.msra.mxu0 0.0
        %755 = vmatprep.subr.mxu0 0.0
        %756 = vmatpush1.msra.mxu0 0.0
        %757 = vmatprep.subr.mxu0 0.0
        %758 = vmatpush1.msra.mxu0 0.0
        %759 = vmatprep.subr.mxu0 0.0
        %760 = vmatpush1.msra.mxu0 0.0
        %761 = vmatprep.subr.mxu0 0.0
        %762 = vmatpush1.msra.mxu0 0.0
        %763 = vmatprep.subr.mxu0 0.0
        %764 = vmatpush1.msra.mxu0 0.0
        %765 = vmatprep.subr.mxu0 0.0
        %766 = vmatpush1.msra.mxu0 0.0
        %767 = vmatprep.subr.mxu0 0.0
        %768 = vmatpush1.msra.mxu0 0.0
        %769 = vmatprep.subr.mxu0 0.0
        %770 = vmatpush1.msra.mxu0 %v552
        %771 = vmatprep.subr.mxu0 0.0
        %772 = vmatpush2.msra.mxu0 0.0
        %773 = vmatprep.subr.mxu0 0.0
        %774 = vmatpush2.msra.mxu0 0.0
        %775 = vmatprep.subr.mxu0 0.0
        %776 = vmatpush2.msra.mxu0 0.0
        %777 = vmatprep.subr.mxu0 0.0
        %778 = vmatpush2.msra.mxu0 0.0
        %779 = vmatprep.subr.mxu0 0.0
        %780 = vmatpush2.msra.mxu0 0.0
        %781 = vmatprep.subr.mxu0 0.0
        %782 = vmatpush2.msra.mxu0 0.0
        %783 = vmatprep.subr.mxu0 0.0
        %784 = vmatpush2.msra.mxu0 0.0
        %785 = vmatprep.subr.mxu0 0.0
        %786 = vmatpush2.msra.mxu0 0.0
        %787 = vmatprep.subr.mxu0 0.0
        %788 = vmatpush2.msra.mxu0 0.0
        %789 = vmatprep.subr.mxu0 0.0
        %790 = vmatpush2.msra.mxu0 0.0
        %791 = vmatprep.subr.mxu0 0.0
        %792 = vmatpush2.msra.mxu0 0.0
        %793 = vmatprep.subr.mxu0 0.0
        %794 = vmatpush2.msra.mxu0 0.0
        %795 = vmatprep.subr.mxu0 0.0
        %796 = vmatpush2.msra.mxu0 0.0
        %797 = vmatprep.subr.mxu0 0.0
        %798 = vmatpush2.msra.mxu0 0.0
        %799 = vmatprep.subr.mxu0 0.0
        %800 = vmatpush2.msra.mxu0 0.0
        %801 = vmatprep.subr.mxu0 0.0
        %802 = vmatpush2.msra.mxu0 0.0
        %803 = vmatprep.mubr.f32.mxu0 0.0
        %804 = vmatmul.mubr.f32.gmra.mxu0 %v737
        %v805 = vpop.f32.mrf.mxu0
        %v806 = vadd.f32 0.0, %v805
        %v807 = vpop.f32.mrf.mxu0
        %808 = vdwg.mxu0
        %v810 = vsel %vm713, %v735, 0
        %812 = vmatprep.subr.mxu0 0.0
        %813 = vmatpush1.msra.mxu0 0.0
        %814 = vmatprep.subr.mxu0 0.0
        %815 = vmatpush1.msra.mxu0 0.0
        %816 = vmatprep.subr.mxu0 0.0
        %817 = vmatpush1.msra.mxu0 0.0
        %818 = vmatprep.subr.mxu0 0.0
        %819 = vmatpush1.msra.mxu0 0.0
        %820 = vmatprep.subr.mxu0 0.0
        %821 = vmatpush1.msra.mxu0 0.0
        %822 = vmatprep.subr.mxu0 0.0
        %823 = vmatpush1.msra.mxu0 0.0
        %824 = vmatprep.subr.mxu0 0.0
        %825 = vmatpush1.msra.mxu0 0.0
        %826 = vmatprep.subr.mxu0 0.0
        %827 = vmatpush1.msra.mxu0 0.0
        %828 = vmatprep.subr.mxu0 0.0
        %829 = vmatpush1.msra.mxu0 0.0
        %830 = vmatprep.subr.mxu0 0.0
        %831 = vmatpush1.msra.mxu0 0.0
        %832 = vmatprep.subr.mxu0 0.0
        %833 = vmatpush1.msra.mxu0 0.0
        %834 = vmatprep.subr.mxu0 0.0
        %835 = vmatpush1.msra.mxu0 0.0
        %836 = vmatprep.subr.mxu0 0.0
        %837 = vmatpush1.msra.mxu0 0.0
        %838 = vmatprep.subr.mxu0 0.0
        %839 = vmatpush1.msra.mxu0 0.0
        %840 = vmatprep.subr.mxu0 0.0
        %841 = vmatpush1.msra.mxu0 0.0
        %842 = vmatprep.subr.mxu0 0.0
        %843 = vmatpush1.msra.mxu0 %v558
        %844 = vmatprep.subr.mxu0 0.0
        %845 = vmatpush2.msra.mxu0 0.0
        %846 = vmatprep.subr.mxu0 0.0
        %847 = vmatpush2.msra.mxu0 0.0
        %848 = vmatprep.subr.mxu0 0.0
        %849 = vmatpush2.msra.mxu0 0.0
        %850 = vmatprep.subr.mxu0 0.0
        %851 = vmatpush2.msra.mxu0 0.0
        %852 = vmatprep.subr.mxu0 0.0
        %853 = vmatpush2.msra.mxu0 0.0
        %854 = vmatprep.subr.mxu0 0.0
        %855 = vmatpush2.msra.mxu0 0.0
        %856 = vmatprep.subr.mxu0 0.0
        %857 = vmatpush2.msra.mxu0 0.0
        %858 = vmatprep.subr.mxu0 0.0
        %859 = vmatpush2.msra.mxu0 0.0
        %860 = vmatprep.subr.mxu0 0.0
        %861 = vmatpush2.msra.mxu0 0.0
        %862 = vmatprep.subr.mxu0 0.0
        %863 = vmatpush2.msra.mxu0 0.0
        %864 = vmatprep.subr.mxu0 0.0
        %865 = vmatpush2.msra.mxu0 0.0
        %866 = vmatprep.subr.mxu0 0.0
        %867 = vmatpush2.msra.mxu0 0.0
        %868 = vmatprep.subr.mxu0 0.0
        %869 = vmatpush2.msra.mxu0 0.0
        %870 = vmatprep.subr.mxu0 0.0
        %871 = vmatpush2.msra.mxu0 0.0
        %872 = vmatprep.subr.mxu0 0.0
        %873 = vmatpush2.msra.mxu0 0.0
        %874 = vmatprep.subr.mxu0 0.0
        %875 = vmatpush2.msra.mxu0 0.0
        %876 = vmatprep.mubr.f32.mxu0 0.0
        %877 = vmatmul.mubr.f32.gmra.mxu0 %v810
        %v878 = vpop.f32.mrf.mxu0
        %v879 = vadd.f32 0.0, %v878
        %v880 = vpop.f32.mrf.mxu0
        %881 = vdwg.mxu0
        %882 = vrot.lane.b32.xlu0 %v443, 96
        %v883 = vpop.permute.xlu0 %882
        %884 = vrot.lane.b32.xlu0 %v550, 96
        %v885 = vpop.permute.xlu0 %884
        %v886 = vsel %vm560, %v883, 0
        %v888 = vsel %vm560, %v885, 0
        %890 = vmatprep.subr.mxu0 0.0
        %891 = vmatpush1.xpose.msra.mxu0 0.0
        %892 = vmatprep.subr.mxu0 0.0
        %893 = vmatpush1.xpose.msra.mxu0 0.0
        %894 = vmatprep.subr.mxu0 0.0
        %895 = vmatpush1.xpose.msra.mxu0 0.0
        %896 = vmatprep.subr.mxu0 0.0
        %897 = vmatpush1.xpose.msra.mxu0 0.0
        %898 = vmatprep.subr.mxu0 0.0
        %899 = vmatpush1.xpose.msra.mxu0 0.0
        %900 = vmatprep.subr.mxu0 0.0
        %901 = vmatpush1.xpose.msra.mxu0 0.0
        %902 = vmatprep.subr.mxu0 0.0
        %903 = vmatpush1.xpose.msra.mxu0 0.0
        %904 = vmatprep.subr.mxu0 0.0
        %905 = vmatpush1.xpose.msra.mxu0 0.0
        %906 = vmatprep.subr.mxu0 0.0
        %907 = vmatpush1.xpose.msra.mxu0 0.0
        %908 = vmatprep.subr.mxu0 0.0
        %909 = vmatpush1.xpose.msra.mxu0 0.0
        %910 = vmatprep.subr.mxu0 0.0
        %911 = vmatpush1.xpose.msra.mxu0 0.0
        %912 = vmatprep.subr.mxu0 0.0
        %913 = vmatpush1.xpose.msra.mxu0 0.0
        %914 = vmatprep.subr.mxu0 0.0
        %915 = vmatpush1.xpose.msra.mxu0 0.0
        %916 = vmatprep.subr.mxu0 0.0
        %917 = vmatpush1.xpose.msra.mxu0 0.0
        %918 = vmatprep.subr.mxu0 0.0
        %919 = vmatpush1.xpose.msra.mxu0 0.0
        %920 = vmatprep.subr.mxu0 0.0
        %921 = vmatpush1.xpose.msra.mxu0 %v888
        %922 = vmatprep.subr.mxu0 0.0
        %923 = vmatpush2.xpose.msra.mxu0 0.0
        %924 = vmatprep.subr.mxu0 0.0
        %925 = vmatpush2.xpose.msra.mxu0 0.0
        %926 = vmatprep.subr.mxu0 0.0
        %927 = vmatpush2.xpose.msra.mxu0 0.0
        %928 = vmatprep.subr.mxu0 0.0
        %929 = vmatpush2.xpose.msra.mxu0 0.0
        %930 = vmatprep.subr.mxu0 0.0
        %931 = vmatpush2.xpose.msra.mxu0 0.0
        %932 = vmatprep.subr.mxu0 0.0
        %933 = vmatpush2.xpose.msra.mxu0 0.0
        %934 = vmatprep.subr.mxu0 0.0
        %935 = vmatpush2.xpose.msra.mxu0 0.0
        %936 = vmatprep.subr.mxu0 0.0
        %937 = vmatpush2.xpose.msra.mxu0 0.0
        %938 = vmatprep.subr.mxu0 0.0
        %939 = vmatpush2.xpose.msra.mxu0 0.0
        %940 = vmatprep.subr.mxu0 0.0
        %941 = vmatpush2.xpose.msra.mxu0 0.0
        %942 = vmatprep.subr.mxu0 0.0
        %943 = vmatpush2.xpose.msra.mxu0 0.0
        %944 = vmatprep.subr.mxu0 0.0
        %945 = vmatpush2.xpose.msra.mxu0 0.0
        %946 = vmatprep.subr.mxu0 0.0
        %947 = vmatpush2.xpose.msra.mxu0 0.0
        %948 = vmatprep.subr.mxu0 0.0
        %949 = vmatpush2.xpose.msra.mxu0 0.0
        %950 = vmatprep.subr.mxu0 0.0
        %951 = vmatpush2.xpose.msra.mxu0 0.0
        %952 = vmatprep.subr.mxu0 0.0
        %953 = vmatpush2.xpose.msra.mxu0 0.0
        %954 = vmatprep.mubr.f32.mxu0 0.0
        %955 = vmatmul.mubr.f32.gmra.mxu0 %v886
        %v956 = vpop.f32.mrf.mxu0
        %v957 = vadd.f32 0.0, %v956
        %v958 = vpop.f32.mrf.mxu0
        %959 = vdwg.mxu0
        %960 = vrot.lane.b32.xlu0 %v448, 96
        %v961 = vpop.permute.xlu0 %960
        %962 = vrot.lane.b32.xlu0 %v556, 96
        %v963 = vpop.permute.xlu0 %962
        %v964 = vsel %vm560, %v961, 0
        %v966 = vsel %vm560, %v963, 0
        %968 = vmatprep.subr.mxu0 0.0
        %969 = vmatpush1.xpose.msra.mxu0 0.0
        %970 = vmatprep.subr.mxu0 0.0
        %971 = vmatpush1.xpose.msra.mxu0 0.0
        %972 = vmatprep.subr.mxu0 0.0
        %973 = vmatpush1.xpose.msra.mxu0 0.0
        %974 = vmatprep.subr.mxu0 0.0
        %975 = vmatpush1.xpose.msra.mxu0 0.0
        %976 = vmatprep.subr.mxu0 0.0
        %977 = vmatpush1.xpose.msra.mxu0 0.0
        %978 = vmatprep.subr.mxu0 0.0
        %979 = vmatpush1.xpose.msra.mxu0 0.0
        %980 = vmatprep.subr.mxu0 0.0
        %981 = vmatpush1.xpose.msra.mxu0 0.0
        %982 = vmatprep.subr.mxu0 0.0
        %983 = vmatpush1.xpose.msra.mxu0 0.0
        %984 = vmatprep.subr.mxu0 0.0
        %985 = vmatpush1.xpose.msra.mxu0 0.0
        %986 = vmatprep.subr.mxu0 0.0
        %987 = vmatpush1.xpose.msra.mxu0 0.0
        %988 = vmatprep.subr.mxu0 0.0
        %989 = vmatpush1.xpose.msra.mxu0 0.0
        %990 = vmatprep.subr.mxu0 0.0
        %991 = vmatpush1.xpose.msra.mxu0 0.0
        %992 = vmatprep.subr.mxu0 0.0
        %993 = vmatpush1.xpose.msra.mxu0 0.0
        %994 = vmatprep.subr.mxu0 0.0
        %995 = vmatpush1.xpose.msra.mxu0 0.0
        %996 = vmatprep.subr.mxu0 0.0
        %997 = vmatpush1.xpose.msra.mxu0 0.0
        %998 = vmatprep.subr.mxu0 0.0
        %999 = vmatpush1.xpose.msra.mxu0 %v966
        %1000 = vmatprep.subr.mxu0 0.0
        %1001 = vmatpush2.xpose.msra.mxu0 0.0
        %1002 = vmatprep.subr.mxu0 0.0
        %1003 = vmatpush2.xpose.msra.mxu0 0.0
        %1004 = vmatprep.subr.mxu0 0.0
        %1005 = vmatpush2.xpose.msra.mxu0 0.0
        %1006 = vmatprep.subr.mxu0 0.0
        %1007 = vmatpush2.xpose.msra.mxu0 0.0
        %1008 = vmatprep.subr.mxu0 0.0
        %1009 = vmatpush2.xpose.msra.mxu0 0.0
        %1010 = vmatprep.subr.mxu0 0.0
        %1011 = vmatpush2.xpose.msra.mxu0 0.0
        %1012 = vmatprep.subr.mxu0 0.0
        %1013 = vmatpush2.xpose.msra.mxu0 0.0
        %1014 = vmatprep.subr.mxu0 0.0
        %1015 = vmatpush2.xpose.msra.mxu0 0.0
        %1016 = vmatprep.subr.mxu0 0.0
        %1017 = vmatpush2.xpose.msra.mxu0 0.0
        %1018 = vmatprep.subr.mxu0 0.0
        %1019 = vmatpush2.xpose.msra.mxu0 0.0
        %1020 = vmatprep.subr.mxu0 0.0
        %1021 = vmatpush2.xpose.msra.mxu0 0.0
        %1022 = vmatprep.subr.mxu0 0.0
        %1023 = vmatpush2.xpose.msra.mxu0 0.0
        %1024 = vmatprep.subr.mxu0 0.0
        %1025 = vmatpush2.xpose.msra.mxu0 0.0
        %1026 = vmatprep.subr.mxu0 0.0
        %1027 = vmatpush2.xpose.msra.mxu0 0.0
        %1028 = vmatprep.subr.mxu0 0.0
        %1029 = vmatpush2.xpose.msra.mxu0 0.0
        %1030 = vmatprep.subr.mxu0 0.0
        %1031 = vmatpush2.xpose.msra.mxu0 0.0
        %1032 = vmatprep.mubr.f32.mxu0 0.0
        %1033 = vmatmul.mubr.f32.gmra.mxu0 %v964
        %v1034 = vpop.f32.mrf.mxu0
        %v1035 = vadd.f32 0.0, %v1034
        %v1036 = vpop.f32.mrf.mxu0
        %1037 = vdwg.mxu0
        %v1038 = vsel %vm713, %v957, -inf
        %1039 = vmax.xlane.f32.xlu0 %v1038
        %v1040 = vpop.xlane.xlu0 %1039
        %v1041 = vsel %vm713, %v1035, -inf
        %1042 = vmax.xlane.f32.xlu0 %v1041
        %v1043 = vpop.xlane.xlu0 %1042
        %v1044 = vsub.f32 %v957, %v1040
        %v1045 = vsub.f32 %v1035, %v1043
        %v1046 = vmul.f32 %v1044, 1.442695
        %v1047 = vpow.pop %v1046
        %v1048 = vmul.f32 %v1045, 1.442695
        %v1049 = vpow.pop %v1048
        %v1050 = vsel %vm713, %v1047, 0.0
        %1051 = vadd.xlane.f32.xlu0 %v1050
        %v1052 = vpop.xlane.xlu0 %1051
        %v1053 = vsel %vm713, %v1049, 0.0
        %1054 = vadd.xlane.f32.xlu0 %v1053
        %v1055 = vpop.xlane.xlu0 %1054
        %v1056 = vrcp.pop %v1052
        %v1057 = vrcp.pop %v1055
        %v1058 = vmul.f32 %v1047, %v1056
        %v1059 = vmul.f32 %v1049, %v1057
        %1061 = vrot.lane.b32.xlu0 %v552, 96
        %v1062 = vpop.permute.xlu0 %1061
        %v1065 = vsel %vm713, %v1058, 0
        %1067 = vmatprep.subr.mxu0 0.0
        %1068 = vmatpush1.msra.mxu0 0.0
        %1069 = vmatprep.subr.mxu0 0.0
        %1070 = vmatpush1.msra.mxu0 0.0
        %1071 = vmatprep.subr.mxu0 0.0
        %1072 = vmatpush1.msra.mxu0 0.0
        %1073 = vmatprep.subr.mxu0 0.0
        %1074 = vmatpush1.msra.mxu0 0.0
        %1075 = vmatprep.subr.mxu0 0.0
        %1076 = vmatpush1.msra.mxu0 0.0
        %1077 = vmatprep.subr.mxu0 0.0
        %1078 = vmatpush1.msra.mxu0 0.0
        %1079 = vmatprep.subr.mxu0 0.0
        %1080 = vmatpush1.msra.mxu0 0.0
        %1081 = vmatprep.subr.mxu0 0.0
        %1082 = vmatpush1.msra.mxu0 0.0
        %1083 = vmatprep.subr.mxu0 0.0
        %1084 = vmatpush1.msra.mxu0 0.0
        %1085 = vmatprep.subr.mxu0 0.0
        %1086 = vmatpush1.msra.mxu0 0.0
        %1087 = vmatprep.subr.mxu0 0.0
        %1088 = vmatpush1.msra.mxu0 0.0
        %1089 = vmatprep.subr.mxu0 0.0
        %1090 = vmatpush1.msra.mxu0 0.0
        %1091 = vmatprep.subr.mxu0 0.0
        %1092 = vmatpush1.msra.mxu0 0.0
        %1093 = vmatprep.subr.mxu0 0.0
        %1094 = vmatpush1.msra.mxu0 0.0
        %1095 = vmatprep.subr.mxu0 0.0
        %1096 = vmatpush1.msra.mxu0 0.0
        %1097 = vmatprep.subr.mxu0 0.0
        %1098 = vmatpush1.msra.mxu0 %v1062
        %1099 = vmatprep.subr.mxu0 0.0
        %1100 = vmatpush2.msra.mxu0 0.0
        %1101 = vmatprep.subr.mxu0 0.0
        %1102 = vmatpush2.msra.mxu0 0.0
        %1103 = vmatprep.subr.mxu0 0.0
        %1104 = vmatpush2.msra.mxu0 0.0
        %1105 = vmatprep.subr.mxu0 0.0
        %1106 = vmatpush2.msra.mxu0 0.0
        %1107 = vmatprep.subr.mxu0 0.0
        %1108 = vmatpush2.msra.mxu0 0.0
        %1109 = vmatprep.subr.mxu0 0.0
        %1110 = vmatpush2.msra.mxu0 0.0
        %1111 = vmatprep.subr.mxu0 0.0
        %1112 = vmatpush2.msra.mxu0 0.0
        %1113 = vmatprep.subr.mxu0 0.0
        %1114 = vmatpush2.msra.mxu0 0.0
        %1115 = vmatprep.subr.mxu0 0.0
        %1116 = vmatpush2.msra.mxu0 0.0
        %1117 = vmatprep.subr.mxu0 0.0
        %1118 = vmatpush2.msra.mxu0 0.0
        %1119 = vmatprep.subr.mxu0 0.0
        %1120 = vmatpush2.msra.mxu0 0.0
        %1121 = vmatprep.subr.mxu0 0.0
        %1122 = vmatpush2.msra.mxu0 0.0
        %1123 = vmatprep.subr.mxu0 0.0
        %1124 = vmatpush2.msra.mxu0 0.0
        %1125 = vmatprep.subr.mxu0 0.0
        %1126 = vmatpush2.msra.mxu0 0.0
        %1127 = vmatprep.subr.mxu0 0.0
        %1128 = vmatpush2.msra.mxu0 0.0
        %1129 = vmatprep.subr.mxu0 0.0
        %1130 = vmatpush2.msra.mxu0 0.0
        %1131 = vmatprep.mubr.f32.mxu0 0.0
        %1132 = vmatmul.mubr.f32.gmra.mxu0 %v1065
        %v1133 = vpop.f32.mrf.mxu0
        %v1134 = vadd.f32 0.0, %v1133
        %v1135 = vpop.f32.mrf.mxu0
        %1136 = vdwg.mxu0
        %1138 = vrot.lane.b32.xlu0 %v558, 96
        %v1139 = vpop.permute.xlu0 %1138
        %v1142 = vsel %vm713, %v1059, 0
        %1144 = vmatprep.subr.mxu0 0.0
        %1145 = vmatpush1.msra.mxu0 0.0
        %1146 = vmatprep.subr.mxu0 0.0
        %1147 = vmatpush1.msra.mxu0 0.0
        %1148 = vmatprep.subr.mxu0 0.0
        %1149 = vmatpush1.msra.mxu0 0.0
        %1150 = vmatprep.subr.mxu0 0.0
        %1151 = vmatpush1.msra.mxu0 0.0
        %1152 = vmatprep.subr.mxu0 0.0
        %1153 = vmatpush1.msra.mxu0 0.0
        %1154 = vmatprep.subr.mxu0 0.0
        %1155 = vmatpush1.msra.mxu0 0.0
        %1156 = vmatprep.subr.mxu0 0.0
        %1157 = vmatpush1.msra.mxu0 0.0
        %1158 = vmatprep.subr.mxu0 0.0
        %1159 = vmatpush1.msra.mxu0 0.0
        %1160 = vmatprep.subr.mxu0 0.0
        %1161 = vmatpush1.msra.mxu0 0.0
        %1162 = vmatprep.subr.mxu0 0.0
        %1163 = vmatpush1.msra.mxu0 0.0
        %1164 = vmatprep.subr.mxu0 0.0
        %1165 = vmatpush1.msra.mxu0 0.0
        %1166 = vmatprep.subr.mxu0 0.0
        %1167 = vmatpush1.msra.mxu0 0.0
        %1168 = vmatprep.subr.mxu0 0.0
        %1169 = vmatpush1.msra.mxu0 0.0
        %1170 = vmatprep.subr.mxu0 0.0
        %1171 = vmatpush1.msra.mxu0 0.0
        %1172 = vmatprep.subr.mxu0 0.0
        %1173 = vmatpush1.msra.mxu0 0.0
        %1174 = vmatprep.subr.mxu0 0.0
        %1175 = vmatpush1.msra.mxu0 %v1139
        %1176 = vmatprep.subr.mxu0 0.0
        %1177 = vmatpush2.msra.mxu0 0.0
        %1178 = vmatprep.subr.mxu0 0.0
        %1179 = vmatpush2.msra.mxu0 0.0
        %1180 = vmatprep.subr.mxu0 0.0
        %1181 = vmatpush2.msra.mxu0 0.0
        %1182 = vmatprep.subr.mxu0 0.0
        %1183 = vmatpush2.msra.mxu0 0.0
        %1184 = vmatprep.subr.mxu0 0.0
        %1185 = vmatpush2.msra.mxu0 0.0
        %1186 = vmatprep.subr.mxu0 0.0
        %1187 = vmatpush2.msra.mxu0 0.0
        %1188 = vmatprep.subr.mxu0 0.0
        %1189 = vmatpush2.msra.mxu0 0.0
        %1190 = vmatprep.subr.mxu0 0.0
        %1191 = vmatpush2.msra.mxu0 0.0
        %1192 = vmatprep.subr.mxu0 0.0
        %1193 = vmatpush2.msra.mxu0 0.0
        %1194 = vmatprep.subr.mxu0 0.0
        %1195 = vmatpush2.msra.mxu0 0.0
        %1196 = vmatprep.subr.mxu0 0.0
        %1197 = vmatpush2.msra.mxu0 0.0
        %1198 = vmatprep.subr.mxu0 0.0
        %1199 = vmatpush2.msra.mxu0 0.0
        %1200 = vmatprep.subr.mxu0 0.0
        %1201 = vmatpush2.msra.mxu0 0.0
        %1202 = vmatprep.subr.mxu0 0.0
        %1203 = vmatpush2.msra.mxu0 0.0
        %1204 = vmatprep.subr.mxu0 0.0
        %1205 = vmatpush2.msra.mxu0 0.0
        %1206 = vmatprep.subr.mxu0 0.0
        %1207 = vmatpush2.msra.mxu0 0.0
        %1208 = vmatprep.mubr.f32.mxu0 0.0
        %1209 = vmatmul.mubr.f32.gmra.mxu0 %v1142
        %v1210 = vpop.f32.mrf.mxu0
        %v1211 = vadd.f32 0.0, %v1210
        %v1212 = vpop.f32.mrf.mxu0
        %1213 = vdwg.mxu0
        %1214 = vrot.lane.b32.xlu0 %v443, 64
        %v1215 = vpop.permute.xlu0 %1214
        %1216 = vrot.lane.b32.xlu0 %v550, 64
        %v1217 = vpop.permute.xlu0 %1216
        %v1218 = vsel %vm560, %v1215, 0
        %v1220 = vsel %vm560, %v1217, 0
        %1222 = vmatprep.subr.mxu0 0.0
        %1223 = vmatpush1.xpose.msra.mxu0 0.0
        %1224 = vmatprep.subr.mxu0 0.0
        %1225 = vmatpush1.xpose.msra.mxu0 0.0
        %1226 = vmatprep.subr.mxu0 0.0
        %1227 = vmatpush1.xpose.msra.mxu0 0.0
        %1228 = vmatprep.subr.mxu0 0.0
        %1229 = vmatpush1.xpose.msra.mxu0 0.0
        %1230 = vmatprep.subr.mxu0 0.0
        %1231 = vmatpush1.xpose.msra.mxu0 0.0
        %1232 = vmatprep.subr.mxu0 0.0
        %1233 = vmatpush1.xpose.msra.mxu0 0.0
        %1234 = vmatprep.subr.mxu0 0.0
        %1235 = vmatpush1.xpose.msra.mxu0 0.0
        %1236 = vmatprep.subr.mxu0 0.0
        %1237 = vmatpush1.xpose.msra.mxu0 0.0
        %1238 = vmatprep.subr.mxu0 0.0
        %1239 = vmatpush1.xpose.msra.mxu0 0.0
        %1240 = vmatprep.subr.mxu0 0.0
        %1241 = vmatpush1.xpose.msra.mxu0 0.0
        %1242 = vmatprep.subr.mxu0 0.0
        %1243 = vmatpush1.xpose.msra.mxu0 0.0
        %1244 = vmatprep.subr.mxu0 0.0
        %1245 = vmatpush1.xpose.msra.mxu0 0.0
        %1246 = vmatprep.subr.mxu0 0.0
        %1247 = vmatpush1.xpose.msra.mxu0 0.0
        %1248 = vmatprep.subr.mxu0 0.0
        %1249 = vmatpush1.xpose.msra.mxu0 0.0
        %1250 = vmatprep.subr.mxu0 0.0
        %1251 = vmatpush1.xpose.msra.mxu0 0.0
        %1252 = vmatprep.subr.mxu0 0.0
        %1253 = vmatpush1.xpose.msra.mxu0 %v1220
        %1254 = vmatprep.subr.mxu0 0.0
        %1255 = vmatpush2.xpose.msra.mxu0 0.0
        %1256 = vmatprep.subr.mxu0 0.0
        %1257 = vmatpush2.xpose.msra.mxu0 0.0
        %1258 = vmatprep.subr.mxu0 0.0
        %1259 = vmatpush2.xpose.msra.mxu0 0.0
        %1260 = vmatprep.subr.mxu0 0.0
        %1261 = vmatpush2.xpose.msra.mxu0 0.0
        %1262 = vmatprep.subr.mxu0 0.0
        %1263 = vmatpush2.xpose.msra.mxu0 0.0
        %1264 = vmatprep.subr.mxu0 0.0
        %1265 = vmatpush2.xpose.msra.mxu0 0.0
        %1266 = vmatprep.subr.mxu0 0.0
        %1267 = vmatpush2.xpose.msra.mxu0 0.0
        %1268 = vmatprep.subr.mxu0 0.0
        %1269 = vmatpush2.xpose.msra.mxu0 0.0
        %1270 = vmatprep.subr.mxu0 0.0
        %1271 = vmatpush2.xpose.msra.mxu0 0.0
        %1272 = vmatprep.subr.mxu0 0.0
        %1273 = vmatpush2.xpose.msra.mxu0 0.0
        %1274 = vmatprep.subr.mxu0 0.0
        %1275 = vmatpush2.xpose.msra.mxu0 0.0
        %1276 = vmatprep.subr.mxu0 0.0
        %1277 = vmatpush2.xpose.msra.mxu0 0.0
        %1278 = vmatprep.subr.mxu0 0.0
        %1279 = vmatpush2.xpose.msra.mxu0 0.0
        %1280 = vmatprep.subr.mxu0 0.0
        %1281 = vmatpush2.xpose.msra.mxu0 0.0
        %1282 = vmatprep.subr.mxu0 0.0
        %1283 = vmatpush2.xpose.msra.mxu0 0.0
        %1284 = vmatprep.subr.mxu0 0.0
        %1285 = vmatpush2.xpose.msra.mxu0 0.0
        %1286 = vmatprep.mubr.f32.mxu0 0.0
        %1287 = vmatmul.mubr.f32.gmra.mxu0 %v1218
        %v1288 = vpop.f32.mrf.mxu0
        %v1289 = vadd.f32 0.0, %v1288
        %v1290 = vpop.f32.mrf.mxu0
        %1291 = vdwg.mxu0
        %1292 = vrot.lane.b32.xlu0 %v448, 64
        %v1293 = vpop.permute.xlu0 %1292
        %1294 = vrot.lane.b32.xlu0 %v556, 64
        %v1295 = vpop.permute.xlu0 %1294
        %v1296 = vsel %vm560, %v1293, 0
        %v1298 = vsel %vm560, %v1295, 0
        %1300 = vmatprep.subr.mxu0 0.0
        %1301 = vmatpush1.xpose.msra.mxu0 0.0
        %1302 = vmatprep.subr.mxu0 0.0
        %1303 = vmatpush1.xpose.msra.mxu0 0.0
        %1304 = vmatprep.subr.mxu0 0.0
        %1305 = vmatpush1.xpose.msra.mxu0 0.0
        %1306 = vmatprep.subr.mxu0 0.0
        %1307 = vmatpush1.xpose.msra.mxu0 0.0
        %1308 = vmatprep.subr.mxu0 0.0
        %1309 = vmatpush1.xpose.msra.mxu0 0.0
        %1310 = vmatprep.subr.mxu0 0.0
        %1311 = vmatpush1.xpose.msra.mxu0 0.0
        %1312 = vmatprep.subr.mxu0 0.0
        %1313 = vmatpush1.xpose.msra.mxu0 0.0
        %1314 = vmatprep.subr.mxu0 0.0
        %1315 = vmatpush1.xpose.msra.mxu0 0.0
        %1316 = vmatprep.subr.mxu0 0.0
        %1317 = vmatpush1.xpose.msra.mxu0 0.0
        %1318 = vmatprep.subr.mxu0 0.0
        %1319 = vmatpush1.xpose.msra.mxu0 0.0
        %1320 = vmatprep.subr.mxu0 0.0
        %1321 = vmatpush1.xpose.msra.mxu0 0.0
        %1322 = vmatprep.subr.mxu0 0.0
        %1323 = vmatpush1.xpose.msra.mxu0 0.0
        %1324 = vmatprep.subr.mxu0 0.0
        %1325 = vmatpush1.xpose.msra.mxu0 0.0
        %1326 = vmatprep.subr.mxu0 0.0
        %1327 = vmatpush1.xpose.msra.mxu0 0.0
        %1328 = vmatprep.subr.mxu0 0.0
        %1329 = vmatpush1.xpose.msra.mxu0 0.0
        %1330 = vmatprep.subr.mxu0 0.0
        %1331 = vmatpush1.xpose.msra.mxu0 %v1298
        %1332 = vmatprep.subr.mxu0 0.0
        %1333 = vmatpush2.xpose.msra.mxu0 0.0
        %1334 = vmatprep.subr.mxu0 0.0
        %1335 = vmatpush2.xpose.msra.mxu0 0.0
        %1336 = vmatprep.subr.mxu0 0.0
        %1337 = vmatpush2.xpose.msra.mxu0 0.0
        %1338 = vmatprep.subr.mxu0 0.0
        %1339 = vmatpush2.xpose.msra.mxu0 0.0
        %1340 = vmatprep.subr.mxu0 0.0
        %1341 = vmatpush2.xpose.msra.mxu0 0.0
        %1342 = vmatprep.subr.mxu0 0.0
        %1343 = vmatpush2.xpose.msra.mxu0 0.0
        %1344 = vmatprep.subr.mxu0 0.0
        %1345 = vmatpush2.xpose.msra.mxu0 0.0
        %1346 = vmatprep.subr.mxu0 0.0
        %1347 = vmatpush2.xpose.msra.mxu0 0.0
        %1348 = vmatprep.subr.mxu0 0.0
        %1349 = vmatpush2.xpose.msra.mxu0 0.0
        %1350 = vmatprep.subr.mxu0 0.0
        %1351 = vmatpush2.xpose.msra.mxu0 0.0
        %1352 = vmatprep.subr.mxu0 0.0
        %1353 = vmatpush2.xpose.msra.mxu0 0.0
        %1354 = vmatprep.subr.mxu0 0.0
        %1355 = vmatpush2.xpose.msra.mxu0 0.0
        %1356 = vmatprep.subr.mxu0 0.0
        %1357 = vmatpush2.xpose.msra.mxu0 0.0
        %1358 = vmatprep.subr.mxu0 0.0
        %1359 = vmatpush2.xpose.msra.mxu0 0.0
        %1360 = vmatprep.subr.mxu0 0.0
        %1361 = vmatpush2.xpose.msra.mxu0 0.0
        %1362 = vmatprep.subr.mxu0 0.0
        %1363 = vmatpush2.xpose.msra.mxu0 0.0
        %1364 = vmatprep.mubr.f32.mxu0 0.0
        %1365 = vmatmul.mubr.f32.gmra.mxu0 %v1296
        %v1366 = vpop.f32.mrf.mxu0
        %v1367 = vadd.f32 0.0, %v1366
        %v1368 = vpop.f32.mrf.mxu0
        %1369 = vdwg.mxu0
        %v1370 = vsel %vm713, %v1289, -inf
        %1371 = vmax.xlane.f32.xlu0 %v1370
        %v1372 = vpop.xlane.xlu0 %1371
        %v1373 = vsel %vm713, %v1367, -inf
        %1374 = vmax.xlane.f32.xlu0 %v1373
        %v1375 = vpop.xlane.xlu0 %1374
        %v1376 = vsub.f32 %v1289, %v1372
        %v1377 = vsub.f32 %v1367, %v1375
        %v1378 = vmul.f32 %v1376, 1.442695
        %v1379 = vpow.pop %v1378
        %v1380 = vmul.f32 %v1377, 1.442695
        %v1381 = vpow.pop %v1380
        %v1382 = vsel %vm713, %v1379, 0.0
        %1383 = vadd.xlane.f32.xlu0 %v1382
        %v1384 = vpop.xlane.xlu0 %1383
        %v1385 = vsel %vm713, %v1381, 0.0
        %1386 = vadd.xlane.f32.xlu0 %v1385
        %v1387 = vpop.xlane.xlu0 %1386
        %v1388 = vrcp.pop %v1384
        %v1389 = vrcp.pop %v1387
        %v1390 = vmul.f32 %v1379, %v1388
        %v1391 = vmul.f32 %v1381, %v1389
        %1392 = vrot.lane.b32.xlu0 %v552, 64
        %v1393 = vpop.permute.xlu0 %1392
        %v1396 = vsel %vm713, %v1390, 0
        %1398 = vmatprep.subr.mxu0 0.0
        %1399 = vmatpush1.msra.mxu0 0.0
        %1400 = vmatprep.subr.mxu0 0.0
        %1401 = vmatpush1.msra.mxu0 0.0
        %1402 = vmatprep.subr.mxu0 0.0
        %1403 = vmatpush1.msra.mxu0 0.0
        %1404 = vmatprep.subr.mxu0 0.0
        %1405 = vmatpush1.msra.mxu0 0.0
        %1406 = vmatprep.subr.mxu0 0.0
        %1407 = vmatpush1.msra.mxu0 0.0
        %1408 = vmatprep.subr.mxu0 0.0
        %1409 = vmatpush1.msra.mxu0 0.0
        %1410 = vmatprep.subr.mxu0 0.0
        %1411 = vmatpush1.msra.mxu0 0.0
        %1412 = vmatprep.subr.mxu0 0.0
        %1413 = vmatpush1.msra.mxu0 0.0
        %1414 = vmatprep.subr.mxu0 0.0
        %1415 = vmatpush1.msra.mxu0 0.0
        %1416 = vmatprep.subr.mxu0 0.0
        %1417 = vmatpush1.msra.mxu0 0.0
        %1418 = vmatprep.subr.mxu0 0.0
        %1419 = vmatpush1.msra.mxu0 0.0
        %1420 = vmatprep.subr.mxu0 0.0
        %1421 = vmatpush1.msra.mxu0 0.0
        %1422 = vmatprep.subr.mxu0 0.0
        %1423 = vmatpush1.msra.mxu0 0.0
        %1424 = vmatprep.subr.mxu0 0.0
        %1425 = vmatpush1.msra.mxu0 0.0
        %1426 = vmatprep.subr.mxu0 0.0
        %1427 = vmatpush1.msra.mxu0 0.0
        %1428 = vmatprep.subr.mxu0 0.0
        %1429 = vmatpush1.msra.mxu0 %v1393
        %1430 = vmatprep.subr.mxu0 0.0
        %1431 = vmatpush2.msra.mxu0 0.0
        %1432 = vmatprep.subr.mxu0 0.0
        %1433 = vmatpush2.msra.mxu0 0.0
        %1434 = vmatprep.subr.mxu0 0.0
        %1435 = vmatpush2.msra.mxu0 0.0
        %1436 = vmatprep.subr.mxu0 0.0
        %1437 = vmatpush2.msra.mxu0 0.0
        %1438 = vmatprep.subr.mxu0 0.0
        %1439 = vmatpush2.msra.mxu0 0.0
        %1440 = vmatprep.subr.mxu0 0.0
        %1441 = vmatpush2.msra.mxu0 0.0
        %1442 = vmatprep.subr.mxu0 0.0
        %1443 = vmatpush2.msra.mxu0 0.0
        %1444 = vmatprep.subr.mxu0 0.0
        %1445 = vmatpush2.msra.mxu0 0.0
        %1446 = vmatprep.subr.mxu0 0.0
        %1447 = vmatpush2.msra.mxu0 0.0
        %1448 = vmatprep.subr.mxu0 0.0
        %1449 = vmatpush2.msra.mxu0 0.0
        %1450 = vmatprep.subr.mxu0 0.0
        %1451 = vmatpush2.msra.mxu0 0.0
        %1452 = vmatprep.subr.mxu0 0.0
        %1453 = vmatpush2.msra.mxu0 0.0
        %1454 = vmatprep.subr.mxu0 0.0
        %1455 = vmatpush2.msra.mxu0 0.0
        %1456 = vmatprep.subr.mxu0 0.0
        %1457 = vmatpush2.msra.mxu0 0.0
        %1458 = vmatprep.subr.mxu0 0.0
        %1459 = vmatpush2.msra.mxu0 0.0
        %1460 = vmatprep.subr.mxu0 0.0
        %1461 = vmatpush2.msra.mxu0 0.0
        %1462 = vmatprep.mubr.f32.mxu0 0.0
        %1463 = vmatmul.mubr.f32.gmra.mxu0 %v1396
        %v1464 = vpop.f32.mrf.mxu0
        %v1465 = vadd.f32 0.0, %v1464
        %v1466 = vpop.f32.mrf.mxu0
        %1467 = vdwg.mxu0
        %1468 = vrot.lane.b32.xlu0 %v558, 64
        %v1469 = vpop.permute.xlu0 %1468
        %v1472 = vsel %vm713, %v1391, 0
        %1474 = vmatprep.subr.mxu0 0.0
        %1475 = vmatpush1.msra.mxu0 0.0
        %1476 = vmatprep.subr.mxu0 0.0
        %1477 = vmatpush1.msra.mxu0 0.0
        %1478 = vmatprep.subr.mxu0 0.0
        %1479 = vmatpush1.msra.mxu0 0.0
        %1480 = vmatprep.subr.mxu0 0.0
        %1481 = vmatpush1.msra.mxu0 0.0
        %1482 = vmatprep.subr.mxu0 0.0
        %1483 = vmatpush1.msra.mxu0 0.0
        %1484 = vmatprep.subr.mxu0 0.0
        %1485 = vmatpush1.msra.mxu0 0.0
        %1486 = vmatprep.subr.mxu0 0.0
        %1487 = vmatpush1.msra.mxu0 0.0
        %1488 = vmatprep.subr.mxu0 0.0
        %1489 = vmatpush1.msra.mxu0 0.0
        %1490 = vmatprep.subr.mxu0 0.0
        %1491 = vmatpush1.msra.mxu0 0.0
        %1492 = vmatprep.subr.mxu0 0.0
        %1493 = vmatpush1.msra.mxu0 0.0
        %1494 = vmatprep.subr.mxu0 0.0
        %1495 = vmatpush1.msra.mxu0 0.0
        %1496 = vmatprep.subr.mxu0 0.0
        %1497 = vmatpush1.msra.mxu0 0.0
        %1498 = vmatprep.subr.mxu0 0.0
        %1499 = vmatpush1.msra.mxu0 0.0
        %1500 = vmatprep.subr.mxu0 0.0
        %1501 = vmatpush1.msra.mxu0 0.0
        %1502 = vmatprep.subr.mxu0 0.0
        %1503 = vmatpush1.msra.mxu0 0.0
        %1504 = vmatprep.subr.mxu0 0.0
        %1505 = vmatpush1.msra.mxu0 %v1469
        %1506 = vmatprep.subr.mxu0 0.0
        %1507 = vmatpush2.msra.mxu0 0.0
        %1508 = vmatprep.subr.mxu0 0.0
        %1509 = vmatpush2.msra.mxu0 0.0
        %1510 = vmatprep.subr.mxu0 0.0
        %1511 = vmatpush2.msra.mxu0 0.0
        %1512 = vmatprep.subr.mxu0 0.0
        %1513 = vmatpush2.msra.mxu0 0.0
        %1514 = vmatprep.subr.mxu0 0.0
        %1515 = vmatpush2.msra.mxu0 0.0
        %1516 = vmatprep.subr.mxu0 0.0
        %1517 = vmatpush2.msra.mxu0 0.0
        %1518 = vmatprep.subr.mxu0 0.0
        %1519 = vmatpush2.msra.mxu0 0.0
        %1520 = vmatprep.subr.mxu0 0.0
        %1521 = vmatpush2.msra.mxu0 0.0
        %1522 = vmatprep.subr.mxu0 0.0
        %1523 = vmatpush2.msra.mxu0 0.0
        %1524 = vmatprep.subr.mxu0 0.0
        %1525 = vmatpush2.msra.mxu0 0.0
        %1526 = vmatprep.subr.mxu0 0.0
        %1527 = vmatpush2.msra.mxu0 0.0
        %1528 = vmatprep.subr.mxu0 0.0
        %1529 = vmatpush2.msra.mxu0 0.0
        %1530 = vmatprep.subr.mxu0 0.0
        %1531 = vmatpush2.msra.mxu0 0.0
        %1532 = vmatprep.subr.mxu0 0.0
        %1533 = vmatpush2.msra.mxu0 0.0
        %1534 = vmatprep.subr.mxu0 0.0
        %1535 = vmatpush2.msra.mxu0 0.0
        %1536 = vmatprep.subr.mxu0 0.0
        %1537 = vmatpush2.msra.mxu0 0.0
        %1538 = vmatprep.mubr.f32.mxu0 0.0
        %1539 = vmatmul.mubr.f32.gmra.mxu0 %v1472
        %v1540 = vpop.f32.mrf.mxu0
        %v1541 = vadd.f32 0.0, %v1540
        %v1542 = vpop.f32.mrf.mxu0
        %1543 = vdwg.mxu0
        %1544 = vrot.lane.b32.xlu0 %v443, 32
        %v1545 = vpop.permute.xlu0 %1544
        %1546 = vrot.lane.b32.xlu0 %v550, 32
        %v1547 = vpop.permute.xlu0 %1546
        %v1548 = vsel %vm560, %v1545, 0
        %v1550 = vsel %vm560, %v1547, 0
        %1552 = vmatprep.subr.mxu0 0.0
        %1553 = vmatpush1.xpose.msra.mxu0 0.0
        %1554 = vmatprep.subr.mxu0 0.0
        %1555 = vmatpush1.xpose.msra.mxu0 0.0
        %1556 = vmatprep.subr.mxu0 0.0
        %1557 = vmatpush1.xpose.msra.mxu0 0.0
        %1558 = vmatprep.subr.mxu0 0.0
        %1559 = vmatpush1.xpose.msra.mxu0 0.0
        %1560 = vmatprep.subr.mxu0 0.0
        %1561 = vmatpush1.xpose.msra.mxu0 0.0
        %1562 = vmatprep.subr.mxu0 0.0
        %1563 = vmatpush1.xpose.msra.mxu0 0.0
        %1564 = vmatprep.subr.mxu0 0.0
        %1565 = vmatpush1.xpose.msra.mxu0 0.0
        %1566 = vmatprep.subr.mxu0 0.0
        %1567 = vmatpush1.xpose.msra.mxu0 0.0
        %1568 = vmatprep.subr.mxu0 0.0
        %1569 = vmatpush1.xpose.msra.mxu0 0.0
        %1570 = vmatprep.subr.mxu0 0.0
        %1571 = vmatpush1.xpose.msra.mxu0 0.0
        %1572 = vmatprep.subr.mxu0 0.0
        %1573 = vmatpush1.xpose.msra.mxu0 0.0
        %1574 = vmatprep.subr.mxu0 0.0
        %1575 = vmatpush1.xpose.msra.mxu0 0.0
        %1576 = vmatprep.subr.mxu0 0.0
        %1577 = vmatpush1.xpose.msra.mxu0 0.0
        %1578 = vmatprep.subr.mxu0 0.0
        %1579 = vmatpush1.xpose.msra.mxu0 0.0
        %1580 = vmatprep.subr.mxu0 0.0
        %1581 = vmatpush1.xpose.msra.mxu0 0.0
        %1582 = vmatprep.subr.mxu0 0.0
        %1583 = vmatpush1.xpose.msra.mxu0 %v1550
        %1584 = vmatprep.subr.mxu0 0.0
        %1585 = vmatpush2.xpose.msra.mxu0 0.0
        %1586 = vmatprep.subr.mxu0 0.0
        %1587 = vmatpush2.xpose.msra.mxu0 0.0
        %1588 = vmatprep.subr.mxu0 0.0
        %1589 = vmatpush2.xpose.msra.mxu0 0.0
        %1590 = vmatprep.subr.mxu0 0.0
        %1591 = vmatpush2.xpose.msra.mxu0 0.0
        %1592 = vmatprep.subr.mxu0 0.0
        %1593 = vmatpush2.xpose.msra.mxu0 0.0
        %1594 = vmatprep.subr.mxu0 0.0
        %1595 = vmatpush2.xpose.msra.mxu0 0.0
        %1596 = vmatprep.subr.mxu0 0.0
        %1597 = vmatpush2.xpose.msra.mxu0 0.0
        %1598 = vmatprep.subr.mxu0 0.0
        %1599 = vmatpush2.xpose.msra.mxu0 0.0
        %1600 = vmatprep.subr.mxu0 0.0
        %1601 = vmatpush2.xpose.msra.mxu0 0.0
        %1602 = vmatprep.subr.mxu0 0.0
        %1603 = vmatpush2.xpose.msra.mxu0 0.0
        %1604 = vmatprep.subr.mxu0 0.0
        %1605 = vmatpush2.xpose.msra.mxu0 0.0
        %1606 = vmatprep.subr.mxu0 0.0
        %1607 = vmatpush2.xpose.msra.mxu0 0.0
        %1608 = vmatprep.subr.mxu0 0.0
        %1609 = vmatpush2.xpose.msra.mxu0 0.0
        %1610 = vmatprep.subr.mxu0 0.0
        %1611 = vmatpush2.xpose.msra.mxu0 0.0
        %1612 = vmatprep.subr.mxu0 0.0
        %1613 = vmatpush2.xpose.msra.mxu0 0.0
        %1614 = vmatprep.subr.mxu0 0.0
        %1615 = vmatpush2.xpose.msra.mxu0 0.0
        %1616 = vmatprep.mubr.f32.mxu0 0.0
        %1617 = vmatmul.mubr.f32.gmra.mxu0 %v1548
        %v1618 = vpop.f32.mrf.mxu0
        %v1619 = vadd.f32 0.0, %v1618
        %v1620 = vpop.f32.mrf.mxu0
        %1621 = vdwg.mxu0
        %1622 = vrot.lane.b32.xlu0 %v448, 32
        %v1623 = vpop.permute.xlu0 %1622
        %1624 = vrot.lane.b32.xlu0 %v556, 32
        %v1625 = vpop.permute.xlu0 %1624
        %v1626 = vsel %vm560, %v1623, 0
        %v1628 = vsel %vm560, %v1625, 0
        %1630 = vmatprep.subr.mxu0 0.0
        %1631 = vmatpush1.xpose.msra.mxu0 0.0
        %1632 = vmatprep.subr.mxu0 0.0
        %1633 = vmatpush1.xpose.msra.mxu0 0.0
        %1634 = vmatprep.subr.mxu0 0.0
        %1635 = vmatpush1.xpose.msra.mxu0 0.0
        %1636 = vmatprep.subr.mxu0 0.0
        %1637 = vmatpush1.xpose.msra.mxu0 0.0
        %1638 = vmatprep.subr.mxu0 0.0
        %1639 = vmatpush1.xpose.msra.mxu0 0.0
        %1640 = vmatprep.subr.mxu0 0.0
        %1641 = vmatpush1.xpose.msra.mxu0 0.0
        %1642 = vmatprep.subr.mxu0 0.0
        %1643 = vmatpush1.xpose.msra.mxu0 0.0
        %1644 = vmatprep.subr.mxu0 0.0
        %1645 = vmatpush1.xpose.msra.mxu0 0.0
        %1646 = vmatprep.subr.mxu0 0.0
        %1647 = vmatpush1.xpose.msra.mxu0 0.0
        %1648 = vmatprep.subr.mxu0 0.0
        %1649 = vmatpush1.xpose.msra.mxu0 0.0
        %1650 = vmatprep.subr.mxu0 0.0
        %1651 = vmatpush1.xpose.msra.mxu0 0.0
        %1652 = vmatprep.subr.mxu0 0.0
        %1653 = vmatpush1.xpose.msra.mxu0 0.0
        %1654 = vmatprep.subr.mxu0 0.0
        %1655 = vmatpush1.xpose.msra.mxu0 0.0
        %1656 = vmatprep.subr.mxu0 0.0
        %1657 = vmatpush1.xpose.msra.mxu0 0.0
        %1658 = vmatprep.subr.mxu0 0.0
        %1659 = vmatpush1.xpose.msra.mxu0 0.0
        %1660 = vmatprep.subr.mxu0 0.0
        %1661 = vmatpush1.xpose.msra.mxu0 %v1628
        %1662 = vmatprep.subr.mxu0 0.0
        %1663 = vmatpush2.xpose.msra.mxu0 0.0
        %1664 = vmatprep.subr.mxu0 0.0
        %1665 = vmatpush2.xpose.msra.mxu0 0.0
        %1666 = vmatprep.subr.mxu0 0.0
        %1667 = vmatpush2.xpose.msra.mxu0 0.0
        %1668 = vmatprep.subr.mxu0 0.0
        %1669 = vmatpush2.xpose.msra.mxu0 0.0
        %1670 = vmatprep.subr.mxu0 0.0
        %1671 = vmatpush2.xpose.msra.mxu0 0.0
        %1672 = vmatprep.subr.mxu0 0.0
        %1673 = vmatpush2.xpose.msra.mxu0 0.0
        %1674 = vmatprep.subr.mxu0 0.0
        %1675 = vmatpush2.xpose.msra.mxu0 0.0
        %1676 = vmatprep.subr.mxu0 0.0
        %1677 = vmatpush2.xpose.msra.mxu0 0.0
        %1678 = vmatprep.subr.mxu0 0.0
        %1679 = vmatpush2.xpose.msra.mxu0 0.0
        %1680 = vmatprep.subr.mxu0 0.0
        %1681 = vmatpush2.xpose.msra.mxu0 0.0
        %1682 = vmatprep.subr.mxu0 0.0
        %1683 = vmatpush2.xpose.msra.mxu0 0.0
        %1684 = vmatprep.subr.mxu0 0.0
        %1685 = vmatpush2.xpose.msra.mxu0 0.0
        %1686 = vmatprep.subr.mxu0 0.0
        %1687 = vmatpush2.xpose.msra.mxu0 0.0
        %1688 = vmatprep.subr.mxu0 0.0
        %1689 = vmatpush2.xpose.msra.mxu0 0.0
        %1690 = vmatprep.subr.mxu0 0.0
        %1691 = vmatpush2.xpose.msra.mxu0 0.0
        %1692 = vmatprep.subr.mxu0 0.0
        %1693 = vmatpush2.xpose.msra.mxu0 0.0
        %1694 = vmatprep.mubr.f32.mxu0 0.0
        %1695 = vmatmul.mubr.f32.gmra.mxu0 %v1626
        %v1696 = vpop.f32.mrf.mxu0
        %v1697 = vadd.f32 0.0, %v1696
        %v1698 = vpop.f32.mrf.mxu0
        %1699 = vdwg.mxu0
        %v1700 = vsel %vm713, %v1619, -inf
        %1701 = vmax.xlane.f32.xlu0 %v1700
        %v1702 = vpop.xlane.xlu0 %1701
        %v1703 = vsel %vm713, %v1697, -inf
        %1704 = vmax.xlane.f32.xlu0 %v1703
        %v1705 = vpop.xlane.xlu0 %1704
        %v1706 = vsub.f32 %v1619, %v1702
        %v1707 = vsub.f32 %v1697, %v1705
        %v1708 = vmul.f32 %v1706, 1.442695
        %v1709 = vpow.pop %v1708
        %v1710 = vmul.f32 %v1707, 1.442695
        %v1711 = vpow.pop %v1710
        %v1712 = vsel %vm713, %v1709, 0.0
        %1713 = vadd.xlane.f32.xlu0 %v1712
        %v1714 = vpop.xlane.xlu0 %1713
        %v1715 = vsel %vm713, %v1711, 0.0
        %1716 = vadd.xlane.f32.xlu0 %v1715
        %v1717 = vpop.xlane.xlu0 %1716
        %v1718 = vrcp.pop %v1714
        %v1719 = vrcp.pop %v1717
        %v1720 = vmul.f32 %v1709, %v1718
        %v1721 = vmul.f32 %v1711, %v1719
        %1722 = vrot.lane.b32.xlu0 %v552, 32
        %v1723 = vpop.permute.xlu0 %1722
        %v1726 = vsel %vm713, %v1720, 0
        %1728 = vmatprep.subr.mxu0 0.0
        %1729 = vmatpush1.msra.mxu0 0.0
        %1730 = vmatprep.subr.mxu0 0.0
        %1731 = vmatpush1.msra.mxu0 0.0
        %1732 = vmatprep.subr.mxu0 0.0
        %1733 = vmatpush1.msra.mxu0 0.0
        %1734 = vmatprep.subr.mxu0 0.0
        %1735 = vmatpush1.msra.mxu0 0.0
        %1736 = vmatprep.subr.mxu0 0.0
        %1737 = vmatpush1.msra.mxu0 0.0
        %1738 = vmatprep.subr.mxu0 0.0
        %1739 = vmatpush1.msra.mxu0 0.0
        %1740 = vmatprep.subr.mxu0 0.0
        %1741 = vmatpush1.msra.mxu0 0.0
        %1742 = vmatprep.subr.mxu0 0.0
        %1743 = vmatpush1.msra.mxu0 0.0
        %1744 = vmatprep.subr.mxu0 0.0
        %1745 = vmatpush1.msra.mxu0 0.0
        %1746 = vmatprep.subr.mxu0 0.0
        %1747 = vmatpush1.msra.mxu0 0.0
        %1748 = vmatprep.subr.mxu0 0.0
        %1749 = vmatpush1.msra.mxu0 0.0
        %1750 = vmatprep.subr.mxu0 0.0
        %1751 = vmatpush1.msra.mxu0 0.0
        %1752 = vmatprep.subr.mxu0 0.0
        %1753 = vmatpush1.msra.mxu0 0.0
        %1754 = vmatprep.subr.mxu0 0.0
        %1755 = vmatpush1.msra.mxu0 0.0
        %1756 = vmatprep.subr.mxu0 0.0
        %1757 = vmatpush1.msra.mxu0 0.0
        %1758 = vmatprep.subr.mxu0 0.0
        %1759 = vmatpush1.msra.mxu0 %v1723
        %1760 = vmatprep.subr.mxu0 0.0
        %1761 = vmatpush2.msra.mxu0 0.0
        %1762 = vmatprep.subr.mxu0 0.0
        %1763 = vmatpush2.msra.mxu0 0.0
        %1764 = vmatprep.subr.mxu0 0.0
        %1765 = vmatpush2.msra.mxu0 0.0
        %1766 = vmatprep.subr.mxu0 0.0
        %1767 = vmatpush2.msra.mxu0 0.0
        %1768 = vmatprep.subr.mxu0 0.0
        %1769 = vmatpush2.msra.mxu0 0.0
        %1770 = vmatprep.subr.mxu0 0.0
        %1771 = vmatpush2.msra.mxu0 0.0
        %1772 = vmatprep.subr.mxu0 0.0
        %1773 = vmatpush2.msra.mxu0 0.0
        %1774 = vmatprep.subr.mxu0 0.0
        %1775 = vmatpush2.msra.mxu0 0.0
        %1776 = vmatprep.subr.mxu0 0.0
        %1777 = vmatpush2.msra.mxu0 0.0
        %1778 = vmatprep.subr.mxu0 0.0
        %1779 = vmatpush2.msra.mxu0 0.0
        %1780 = vmatprep.subr.mxu0 0.0
        %1781 = vmatpush2.msra.mxu0 0.0
        %1782 = vmatprep.subr.mxu0 0.0
        %1783 = vmatpush2.msra.mxu0 0.0
        %1784 = vmatprep.subr.mxu0 0.0
        %1785 = vmatpush2.msra.mxu0 0.0
        %1786 = vmatprep.subr.mxu0 0.0
        %1787 = vmatpush2.msra.mxu0 0.0
        %1788 = vmatprep.subr.mxu0 0.0
        %1789 = vmatpush2.msra.mxu0 0.0
        %1790 = vmatprep.subr.mxu0 0.0
        %1791 = vmatpush2.msra.mxu0 0.0
        %1792 = vmatprep.mubr.f32.mxu0 0.0
        %1793 = vmatmul.mubr.f32.gmra.mxu0 %v1726
        %v1794 = vpop.f32.mrf.mxu0
        %v1795 = vadd.f32 0.0, %v1794
        %v1796 = vpop.f32.mrf.mxu0
        %1797 = vdwg.mxu0
        %1798 = vrot.lane.b32.xlu0 %v558, 32
        %v1799 = vpop.permute.xlu0 %1798
        %v1802 = vsel %vm713, %v1721, 0
        %1804 = vmatprep.subr.mxu0 0.0
        %1805 = vmatpush1.msra.mxu0 0.0
        %1806 = vmatprep.subr.mxu0 0.0
        %1807 = vmatpush1.msra.mxu0 0.0
        %1808 = vmatprep.subr.mxu0 0.0
        %1809 = vmatpush1.msra.mxu0 0.0
        %1810 = vmatprep.subr.mxu0 0.0
        %1811 = vmatpush1.msra.mxu0 0.0
        %1812 = vmatprep.subr.mxu0 0.0
        %1813 = vmatpush1.msra.mxu0 0.0
        %1814 = vmatprep.subr.mxu0 0.0
        %1815 = vmatpush1.msra.mxu0 0.0
        %1816 = vmatprep.subr.mxu0 0.0
        %1817 = vmatpush1.msra.mxu0 0.0
        %1818 = vmatprep.subr.mxu0 0.0
        %1819 = vmatpush1.msra.mxu0 0.0
        %1820 = vmatprep.subr.mxu0 0.0
        %1821 = vmatpush1.msra.mxu0 0.0
        %1822 = vmatprep.subr.mxu0 0.0
        %1823 = vmatpush1.msra.mxu0 0.0
        %1824 = vmatprep.subr.mxu0 0.0
        %1825 = vmatpush1.msra.mxu0 0.0
        %1826 = vmatprep.subr.mxu0 0.0
        %1827 = vmatpush1.msra.mxu0 0.0
        %1828 = vmatprep.subr.mxu0 0.0
        %1829 = vmatpush1.msra.mxu0 0.0
        %1830 = vmatprep.subr.mxu0 0.0
        %1831 = vmatpush1.msra.mxu0 0.0
        %1832 = vmatprep.subr.mxu0 0.0
        %1833 = vmatpush1.msra.mxu0 0.0
        %1834 = vmatprep.subr.mxu0 0.0
        %1835 = vmatpush1.msra.mxu0 %v1799
        %1836 = vmatprep.subr.mxu0 0.0
        %1837 = vmatpush2.msra.mxu0 0.0
        %1838 = vmatprep.subr.mxu0 0.0
        %1839 = vmatpush2.msra.mxu0 0.0
        %1840 = vmatprep.subr.mxu0 0.0
        %1841 = vmatpush2.msra.mxu0 0.0
        %1842 = vmatprep.subr.mxu0 0.0
        %1843 = vmatpush2.msra.mxu0 0.0
        %1844 = vmatprep.subr.mxu0 0.0
        %1845 = vmatpush2.msra.mxu0 0.0
        %1846 = vmatprep.subr.mxu0 0.0
        %1847 = vmatpush2.msra.mxu0 0.0
        %1848 = vmatprep.subr.mxu0 0.0
        %1849 = vmatpush2.msra.mxu0 0.0
        %1850 = vmatprep.subr.mxu0 0.0
        %1851 = vmatpush2.msra.mxu0 0.0
        %1852 = vmatprep.subr.mxu0 0.0
        %1853 = vmatpush2.msra.mxu0 0.0
        %1854 = vmatprep.subr.mxu0 0.0
        %1855 = vmatpush2.msra.mxu0 0.0
        %1856 = vmatprep.subr.mxu0 0.0
        %1857 = vmatpush2.msra.mxu0 0.0
        %1858 = vmatprep.subr.mxu0 0.0
        %1859 = vmatpush2.msra.mxu0 0.0
        %1860 = vmatprep.subr.mxu0 0.0
        %1861 = vmatpush2.msra.mxu0 0.0
        %1862 = vmatprep.subr.mxu0 0.0
        %1863 = vmatpush2.msra.mxu0 0.0
        %1864 = vmatprep.subr.mxu0 0.0
        %1865 = vmatpush2.msra.mxu0 0.0
        %1866 = vmatprep.subr.mxu0 0.0
        %1867 = vmatpush2.msra.mxu0 0.0
        %1868 = vmatprep.mubr.f32.mxu0 0.0
        %1869 = vmatmul.mubr.f32.gmra.mxu0 %v1802
        %v1870 = vpop.f32.mrf.mxu0
        %v1871 = vadd.f32 0.0, %v1870
        %v1872 = vpop.f32.mrf.mxu0
        %1873 = vdwg.mxu0
        %1876 = vrot.lane.b32.xlu0 %v1134, 32
        %v1877 = vpop.permute.xlu0 %1876
        %1878 = vrot.lane.b32.xlu0 %v1211, 32
        %v1879 = vpop.permute.xlu0 %1878
        %1884 = vrot.lane.b32.xlu0 %v1465, 64
        %v1885 = vpop.permute.xlu0 %1884
        %1886 = vrot.lane.b32.xlu0 %v1541, 64
        %v1887 = vpop.permute.xlu0 %1886
        %1892 = vrot.lane.b32.xlu0 %v1795, 96
        %v1893 = vpop.permute.xlu0 %1892
        %1894 = vrot.lane.b32.xlu0 %v1871, 96
        %v1895 = vpop.permute.xlu0 %1894
        %v1898 = vsel %vm560, %v806, %v1877
        %v1899 = vsel %vm560, %v879, %v1879
        %vm1900 = vcmask 523264
        %v1901 = vsel %vm1900, %v1898, %v1885
        %v1902 = vsel %vm1900, %v1899, %v1887
        %vm1903 = vcmask 785408
        %v1904 = vsel %vm1903, %v1901, %v1893
        %v1905 = vsel %vm1903, %v1902, %v1895
        %v1906 = vld [vmem:[#allocation10] sm:$0xff]
        %v1907 = vld [vmem:[#allocation10 + $0x8] sm:$0xff]
        %v1908 = vld [vmem:[#allocation10 + $0x10] sm:$0xff]
        %v1909 = vld [vmem:[#allocation10 + $0x18] sm:$0xff]
        %v1910 = vld [vmem:[#allocation10 + $0x20] sm:$0xff]
        %v1911 = vld [vmem:[#allocation10 + $0x28] sm:$0xff]
        %v1912 = vld [vmem:[#allocation10 + $0x30] sm:$0xff]
        %v1913 = vld [vmem:[#allocation10 + $0x38] sm:$0xff]
        %v1914 = vld [vmem:[#allocation10 + $0x40] sm:$0xff]
        %v1915 = vld [vmem:[#allocation10 + $0x48] sm:$0xff]
        %v1916 = vld [vmem:[#allocation10 + $0x50] sm:$0xff]
        %v1917 = vld [vmem:[#allocation10 + $0x58] sm:$0xff]
        %v1918 = vld [vmem:[#allocation10 + $0x60] sm:$0xff]
        %v1919 = vld [vmem:[#allocation10 + $0x68] sm:$0xff]
        %v1920 = vld [vmem:[#allocation10 + $0x70] sm:$0xff]
        %v1921 = vld [vmem:[#allocation10 + $0x78] sm:$0xff]
        %v1922 = vld [vmem:[%s5] sm:$0x1]
        %v1924 = vlaneseq
        %v1925 = vshrl.u32 %v1924, 7
        %v1926 = vsub.s32 0, %v1925
        %v1927 = vrot.slane %v1922, %v1926
        %1929 = vmatprep.subr.mxu0 0.0
        %1930 = vmatpush1.msra.mxu0 %v1921
        %1931 = vmatprep.subr.mxu0 0.0
        %1932 = vmatpush1.msra.mxu0 %v1920
        %1933 = vmatprep.subr.mxu0 0.0
        %1934 = vmatpush1.msra.mxu0 %v1919
        %1935 = vmatprep.subr.mxu0 0.0
        %1936 = vmatpush1.msra.mxu0 %v1918
        %1937 = vmatprep.subr.mxu0 0.0
        %1938 = vmatpush1.msra.mxu0 %v1917
        %1939 = vmatprep.subr.mxu0 0.0
        %1940 = vmatpush1.msra.mxu0 %v1916
        %1941 = vmatprep.subr.mxu0 0.0
        %1942 = vmatpush1.msra.mxu0 %v1915
        %1943 = vmatprep.subr.mxu0 0.0
        %1944 = vmatpush1.msra.mxu0 %v1914
        %1945 = vmatprep.subr.mxu0 0.0
        %1946 = vmatpush1.msra.mxu0 %v1913
        %1947 = vmatprep.subr.mxu0 0.0
        %1948 = vmatpush1.msra.mxu0 %v1912
        %1949 = vmatprep.subr.mxu0 0.0
        %1950 = vmatpush1.msra.mxu0 %v1911
        %1951 = vmatprep.subr.mxu0 0.0
        %1952 = vmatpush1.msra.mxu0 %v1910
        %1953 = vmatprep.subr.mxu0 0.0
        %1954 = vmatpush1.msra.mxu0 %v1909
        %1955 = vmatprep.subr.mxu0 0.0
        %1956 = vmatpush1.msra.mxu0 %v1908
        %1957 = vmatprep.subr.mxu0 0.0
        %1958 = vmatpush1.msra.mxu0 %v1907
        %1959 = vmatprep.subr.mxu0 0.0
        %1960 = vmatpush1.msra.mxu0 %v1906
        %1961 = vmatprep.subr.mxu0 0.0
        %1962 = vmatpush2.msra.mxu0 0.0
        %1963 = vmatprep.subr.mxu0 0.0
        %1964 = vmatpush2.msra.mxu0 0.0
        %1965 = vmatprep.subr.mxu0 0.0
        %1966 = vmatpush2.msra.mxu0 0.0
        %1967 = vmatprep.subr.mxu0 0.0
        %1968 = vmatpush2.msra.mxu0 0.0
        %1969 = vmatprep.subr.mxu0 0.0
        %1970 = vmatpush2.msra.mxu0 0.0
        %1971 = vmatprep.subr.mxu0 0.0
        %1972 = vmatpush2.msra.mxu0 0.0
        %1973 = vmatprep.subr.mxu0 0.0
        %1974 = vmatpush2.msra.mxu0 0.0
        %1975 = vmatprep.subr.mxu0 0.0
        %1976 = vmatpush2.msra.mxu0 0.0
        %1977 = vmatprep.subr.mxu0 0.0
        %1978 = vmatpush2.msra.mxu0 0.0
        %1979 = vmatprep.subr.mxu0 0.0
        %1980 = vmatpush2.msra.mxu0 0.0
        %1981 = vmatprep.subr.mxu0 0.0
        %1982 = vmatpush2.msra.mxu0 0.0
        %1983 = vmatprep.subr.mxu0 0.0
        %1984 = vmatpush2.msra.mxu0 0.0
        %1985 = vmatprep.subr.mxu0 0.0
        %1986 = vmatpush2.msra.mxu0 0.0
        %1987 = vmatprep.subr.mxu0 0.0
        %1988 = vmatpush2.msra.mxu0 0.0
        %1989 = vmatprep.subr.mxu0 0.0
        %1990 = vmatpush2.msra.mxu0 0.0
        %1991 = vmatprep.subr.mxu0 0.0
        %1992 = vmatpush2.msra.mxu0 0.0
        %1993 = vmatprep.mubr.f32.mxu0 0.0
        %1994 = vmatmul.mubr.f32.gmra.mxu0 %v1904
        %v1995 = vpop.f32.mrf.mxu0
        %v1996 = vadd.f32 %v1927, %v1995
        %v1997 = vpop.f32.mrf.mxu0
        %1998 = vmatprep.mubr.f32.mxu0 0.0
        %1999 = vmatmul.mubr.f32.gmra.mxu0 %v1905
        %v2000 = vpop.f32.mrf.mxu0
        %v2001 = vadd.f32 %v1927, %v2000
        %v2002 = vpop.f32.mrf.mxu0
        %2003 = vdwg.mxu0
        %2004 = vst [vmem:[%s352] sm:$0xff] %v1996
        %2005 = vst [vmem:[%s352 + $0x8] sm:$0xff] %v2001
        %s2006 = sand.u32 %s171, 1
        %s2007 = scalar_lea.sflag [#allocation4], %s2006
        %s2008 = sand.u32 %s171, 1
        %s2009 = smul.addr %s2008, 16
        %s2010 = scalar_lea.vmem [#allocation11], %s2009
        // Predicated region
        $region65: #{tpu_custom_call.1} parent=43 // pred_check
          %p2011 = pneg %p181
        $region66: #{tpu_custom_call.1} parent=43 // pred_check_branch
          %2013 = sbr.rel (%p2011) target = $region68
        $region67: #{tpu_custom_call.1} parent=43 // pred_region
          %s2014 = smul.u32 2, %s27
          %s2016 = ssub.s32 256, 256
          %2017 = vsyncadd %s2007, %s2016
          %s2018 = smul.addr %s2014, 128
          %s2019 = scalar_lea.hbm %s6, %s2018
          %s2020 = sshll.u32 %s2010, 4
          %s2021 = int_to_ptr.vmem [resolvable:$true] %s2020
          %2026 = dma.vmem_to_hbm [thread:$0]  %s2021, 256, %s2019, %s2007, 128, 128, 8
        $region68: #{tpu_custom_call.1} parent=43 // pred_fallthru
          _
      $region44: #{tpu_custom_call.1} parent=5 // pred_fallthru
        _
      %p2027 = scmp.le.s32.totalorder 2, %s22
      // Predicated region
      $region69: #{tpu_custom_call.1} parent=5 // pred_check
        %p2028 = pneg %p2027
      $region70: #{tpu_custom_call.1} parent=5 // pred_check_branch
        %2030 = sbr.rel (%p2028) target = $region72
      $region71: #{tpu_custom_call.1} parent=5 // pred_region
        %s2031 = ssub.s32 %s22, 2
        // Predicated region
        $region73: #{tpu_custom_call.1} parent=71 // pred_check
          %p2032 = pneg %p187
        $region74: #{tpu_custom_call.1} parent=71 // pred_check_branch
          %2034 = sbr.rel (%p2032) target = $region76
        $region75: #{tpu_custom_call.1} parent=71 // pred_region
          %s2035 = sand.u32 %s172, 1
          %s2036 = scalar_lea.sflag [#allocation4], %s2035
          %s2037 = sand.u32 %s172, 1
          %s2038 = smul.addr %s2037, 16
          %s2039 = scalar_lea.vmem [#allocation11], %s2038
          %2040 = dma.done %s2036, 256
        $region76: #{tpu_custom_call.1} parent=71 // pred_fallthru
          _
      $region72: #{tpu_custom_call.1} parent=5 // pred_fallthru
        _
    $region6: #{tpu_custom_call.1} parent=1 // loop_footer
      %s26 = sadd.s32 1, %s22
    $region7: #{tpu_custom_call.1} parent=1 // loop_footer_branch
      %21 = sbr.rel target = $region3
    $region8: #{tpu_custom_call.1} parent=1 // loop_exit
      _
    %2041 = vsyncpa [#allocation3], 1
    %s2042 = scalar_lea.sflag [#allocation3], 1
    %2043 = vsyncpa %s2042, 1
    %2044 = vsyncpa [#allocation6], 1
    %s2045 = scalar_lea.sflag [#allocation6], 1
    %2046 = vsyncpa %s2045, 1
    %2047 = vsyncpa [#allocation9], 1
    %2048 = vsyncpa [#allocation4], 1
    %s2049 = scalar_lea.sflag [#allocation4], 1
    %2050 = vsyncpa %s2049, 1

</llo_original>
